<compile_context>
chip_gen: v5e
topology: v5e:2x2
jax: 0.10.0
libtpu: 0.0.40
codegen_flags: <defaults>
</compile_context>

<pallas_src>
import functools

import jax
import jax.numpy as jnp
import numpy as np
from jax.experimental import pallas as pl
from jax.experimental.pallas import tpu as pltpu


# ----------------------------------------------------------------------------
# Pallas kernel: one full transformer block for a (Bt, S, E) batch tile.
# ----------------------------------------------------------------------------
def _transformer_block_kernel(
    x_ref,      # (Bt, S, E)   f32
    wqkv_ref,   # (E, 3E)      bf16  packed in_proj weight, input-major,
                #                     Q columns pre-scaled by 1/sqrt(Dh)
    bqkv_ref,   # (1, 3E)      f32   packed in_proj bias (Q part pre-scaled)
    wo_ref,     # (H, Dh, E)   bf16  out_proj weight, per-head input-major
    bo_ref,     # (1, E)       f32
    g1_ref,     # (1, E)       f32   norm1 gamma
    be1_ref,    # (1, E)       f32   norm1 beta
    w1_ref,     # (E, F)       bf16  feed_forward[0] weight, input-major
    b1_ref,     # (1, F)       f32
    w2_ref,     # (F, E)       bf16  feed_forward[2] weight, input-major
    b2_ref,     # (1, E)       f32
    g2_ref,     # (1, E)       f32   norm2 gamma
    be2_ref,    # (1, E)       f32   norm2 beta
    o_ref,      # (Bt, S, E)   f32
    *,
    num_heads,
    eps,
):
    Bt, S, E = x_ref.shape
    M = Bt * S
    Dh = E // num_heads
    bf16 = jnp.bfloat16

    # The (Bt, S) -> M merge is a free relayout when S % 8 == 0 (sublane tile).
    x2d = x_ref[...].reshape(M, E)

    # ---- packed QKV projection: (M, E) @ (E, 3E); Q scale already folded ------
    qkv = jnp.dot(x2d.astype(bf16), wqkv_ref[...],
                  preferred_element_type=jnp.float32) + bqkv_ref[...]
    qkv = qkv.astype(bf16)     # single downcast; halves the live (M, 3E) tensor

    # ---- attention, batched over the Bt sequences ------------------------------
    # Head merge folded into the output projection: accumulate per-head
    # (M, Dh) @ (Dh, E) matmuls into a lane-dense f32 accumulator (no scratch,
    # no sub-128-lane masked stores, no lane-axis concatenate).
    # TODO(synk): for long sequences (S >~ 512) block the KV axis with an online
    # softmax instead of materializing the full (Bt, S, S) score tensor.
    attn = jnp.zeros((M, E), jnp.float32)
    for h in range(num_heads):
        qh = qkv[:, h * Dh:(h + 1) * Dh].reshape(Bt, S, Dh)
        kh = qkv[:, E + h * Dh:E + (h + 1) * Dh].reshape(Bt, S, Dh)
        vh = qkv[:, 2 * E + h * Dh:2 * E + (h + 1) * Dh].reshape(Bt, S, Dh)

        s = jnp.einsum("bqd,bkd->bqk", qh, kh,
                       preferred_element_type=jnp.float32)        # (Bt, S, S)
        s = s - jnp.max(s, axis=-1, keepdims=True)
        p = jnp.exp(s)
        p = p * pl.reciprocal(jnp.sum(p, axis=-1, keepdims=True), approx=True)
        oh = jnp.einsum("bqk,bkd->bqd", p.astype(bf16), vh,
                        preferred_element_type=jnp.float32)       # (Bt, S, Dh)
        attn = attn + jnp.dot(oh.reshape(M, Dh).astype(bf16), wo_ref[h],
                              preferred_element_type=jnp.float32)
    attn = attn + bo_ref[...]

    # ---- residual + LayerNorm 1 (dropout == identity in eval mode) ------------
    y = x2d + attn
    mu = jnp.mean(y, axis=-1, keepdims=True)
    yc = y - mu
    var = jnp.mean(yc * yc, axis=-1, keepdims=True)
    y1 = yc * jax.lax.rsqrt(var + eps) * g1_ref[...] + be1_ref[...]

    # ---- feed-forward: Linear -> ReLU -> Linear --------------------------------
    h1 = jnp.dot(y1.astype(bf16), w1_ref[...],
                 preferred_element_type=jnp.float32) + b1_ref[...]
    h1 = jnp.maximum(h1, 0.0)
    ff = jnp.dot(h1.astype(bf16), w2_ref[...],
                 preferred_element_type=jnp.float32) + b2_ref[...]

    # ---- residual + LayerNorm 2 -------------------------------------------------
    y2 = y1 + ff
    mu2 = jnp.mean(y2, axis=-1, keepdims=True)
    y2c = y2 - mu2
    var2 = jnp.mean(y2c * y2c, axis=-1, keepdims=True)
    out = y2c * jax.lax.rsqrt(var2 + eps) * g2_ref[...] + be2_ref[...]

    o_ref[...] = out.reshape(Bt, S, E)


# ----------------------------------------------------------------------------
# Generation-aware sizing helpers.
# ----------------------------------------------------------------------------
def _tpu_vmem_capacity_bytes():
    try:
        return int(pltpu.get_tpu_info().vmem_capacity_bytes)
    except Exception:
        return 64 * 1024 * 1024        # conservative default (v7x-sized VMEM)


def _pick_block_batch(B, S, vmem_cap):
    # Bigger tiles on 128 MiB parts (v5e/v6e) amortize per-grid-step overhead;
    # smaller tiles keep v7x's 64 MiB VMEM comfortable.
    small_vmem = vmem_cap <= (80 << 20)
    target_rows = 256 if small_vmem else 1024
    bt = max(1, min(B, max(1, target_rows // S)))
    while B % bt:
        bt -= 1
    # v7x has 2 TensorCores per chip: keep at least 2 batch tiles in the grid.
    if small_vmem and B > 1 and B // bt < 2:
        bt = max(1, bt // 2)
        while B % bt:
            bt -= 1
    return bt


def _vmem_limit_bytes(Bt, S, E, F, weight_bytes, vmem_cap):
    M = Bt * S
    io_tiles = 2 * (2 * Bt * S * E * 4)        # double-buffered x / out tiles
    acts = M * (3 * E * 6 + 16 * E + 6 * F)    # qkv + residual/LN + FFN live
    scores = Bt * S * S * 6                    # one head's scores + probs
    est = int(1.3 * (io_tiles + weight_bytes + acts + scores))
    return min(max(est, 32 << 20), int(0.85 * vmem_cap))


def _invariant_spec(shape):
    # Grid-invariant operands: request a single VMEM buffer (halves weight VMEM).
    nd = len(shape)
    idx = lambda *_args, _n=nd: (0,) * _n
    try:
        return pl.BlockSpec(shape, idx, pipeline_mode=pl.Buffered(1))
    except (AttributeError, TypeError):
        return pl.BlockSpec(shape, idx)


# ----------------------------------------------------------------------------
# One-time weight relayout (call once, reuse across forward calls).
# ----------------------------------------------------------------------------
def prepare_weights(params, *, num_heads):
    bf16, f32 = jnp.bfloat16, jnp.float32
    E = params["wo"].shape[0]
    Dh = E // num_heads
    scale = 1.0 / float(np.sqrt(Dh))

    # Fold the 1/sqrt(Dh) query scale into the Q columns of the packed weight.
    col_scale = jnp.concatenate(
        [jnp.full((E,), scale, f32), jnp.ones((2 * E,), f32)])
    wqkv = (jnp.transpose(params["wqkv"]).astype(f32)
            * col_scale[None, :]).astype(bf16)                    # (E, 3E)
    bqkv = params["bqkv"].astype(f32) * col_scale[None, :]        # (1, 3E)
    wo3 = jnp.transpose(params["wo"]).reshape(num_heads, Dh, E).astype(bf16)

    return (
        wqkv,
        bqkv,
        wo3,                                        # (H, Dh, E) bf16
        params["bo"].astype(f32),
        params["g1"].astype(f32),
        params["be1"].astype(f32),
        jnp.transpose(params["w1"]).astype(bf16),   # (E, F)
        params["b1"].astype(f32),
        jnp.transpose(params["w2"]).astype(bf16),   # (F, E)
        params["b2"].astype(f32),
        params["g2"].astype(f32),
        params["be2"].astype(f32),
    )


# ----------------------------------------------------------------------------
# Wrapper (PyTorch layout: x is (seq, batch, embed), batch_first=False default)
# ----------------------------------------------------------------------------
def transformer_block(x_sbe, prepared_weights, *, num_heads, eps=1e-5,
                      block_batch=None):
    S, B, E = x_sbe.shape
    F = prepared_weights[6].shape[1]
    x_bse = jnp.transpose(x_sbe, (1, 0, 2)).astype(jnp.float32)   # (B, S, E)

    vmem_cap = _tpu_vmem_capacity_bytes()
    Bt = block_batch if block_batch is not None else _pick_block_batch(B, S, vmem_cap)
    assert B % Bt == 0
    grid = (B // Bt,)

    weight_bytes = sum(int(np.prod(w.shape)) * w.dtype.itemsize
                       for w in prepared_weights)
    vmem_limit = _vmem_limit_bytes(Bt, S, E, F, weight_bytes, vmem_cap)

    kernel = functools.partial(_transformer_block_kernel,
                               num_heads=num_heads, eps=eps)

    in_specs = [pl.BlockSpec((Bt, S, E), lambda b: (b, 0, 0))]
    in_specs += [_invariant_spec(w.shape) for w in prepared_weights]

    # TODO(synk): at large F / S, add a grid axis over the FFN hidden dim and a
    # KV-tiled online softmax so activations stay inside v7x's 64 MiB VMEM.
    # TODO(synk): on v7x, consider pltpu.CORE_PARALLEL on the batch grid axis.
    out = pl.pallas_call(
        kernel,
        grid=grid,
        in_specs=in_specs,
        out_specs=pl.BlockSpec((Bt, S, E), lambda b: (b, 0, 0)),
        out_shape=jax.ShapeDtypeStruct((B, S, E), jnp.float32),
        compiler_params=pltpu.CompilerParams(
            dimension_semantics=("parallel",),
            vmem_limit_bytes=vmem_limit,
        ),
    )(x_bse, *prepared_weights)

    return jnp.transpose(out, (1, 0, 2))       # back to (S, B, E)


# ----------------------------------------------------------------------------
# Pure-JAX f32 reference (mirrors PyTorch eval-mode semantics).
# ----------------------------------------------------------------------------
def transformer_block_ref(x_sbe, params, *, num_heads, eps=1e-5):
    S, B, E = x_sbe.shape
    Dh = E // num_heads
    x = jnp.transpose(x_sbe, (1, 0, 2))        # (B, S, E)

    qkv = jnp.einsum("bse,fe->bsf", x, params["wqkv"]) + params["bqkv"][0]
    q, k, v = jnp.split(qkv, 3, axis=-1)

    def split_heads(t):                        # (B, S, E) -> (B, H, S, Dh)
        return t.reshape(B, S, num_heads, Dh).transpose(0, 2, 1, 3)

    qh, kh, vh = split_heads(q), split_heads(k), split_heads(v)
    s = jnp.einsum("bhsd,bhtd->bhst", qh * (1.0 / np.sqrt(Dh)), kh)
    p = jax.nn.softmax(s, axis=-1)
    attn = jnp.einsum("bhst,bhtd->bhsd", p, vh).transpose(0, 2, 1, 3).reshape(B, S, E)
    attn = jnp.einsum("bse,fe->bsf", attn, params["wo"]) + params["bo"][0]

    def ln(t, g, b):
        mu = jnp.mean(t, axis=-1, keepdims=True)
        var = jnp.mean((t - mu) ** 2, axis=-1, keepdims=True)
        return (t - mu) * jax.lax.rsqrt(var + eps) * g[0] + b[0]

    y1 = ln(x + attn, params["g1"], params["be1"])
    h1 = jax.nn.relu(jnp.einsum("bse,fe->bsf", y1, params["w1"]) + params["b1"][0])
    ff = jnp.einsum("bsf,ef->bse", h1, params["w2"]) + params["b2"][0]
    y2 = ln(y1 + ff, params["g2"], params["be2"])
    return jnp.transpose(y2, (1, 0, 2))


# ----------------------------------------------------------------------------
# Deterministic parameter init + demo run.
# ----------------------------------------------------------------------------
def init_params(key, embed_size, ff_hidden_dim):
    ks = jax.random.split(key, 12)
    s = 0.05
    return {
        "wqkv": s * jax.random.normal(ks[0], (3 * embed_size, embed_size), jnp.float32),
        "bqkv": s * jax.random.normal(ks[1], (1, 3 * embed_size), jnp.float32),
        "wo":   s * jax.random.normal(ks[2], (embed_size, embed_size), jnp.float32),
        "bo":   s * jax.random.normal(ks[3], (1, embed_size), jnp.float32),
        "g1":   1.0 + s * jax.random.normal(ks[4], (1, embed_size), jnp.float32),
        "be1":  s * jax.random.normal(ks[5], (1, embed_size), jnp.float32),
        "w1":   s * jax.random.normal(ks[6], (ff_hidden_dim, embed_size), jnp.float32),
        "b1":   s * jax.random.normal(ks[7], (1, ff_hidden_dim), jnp.float32),
        "w2":   s * jax.random.normal(ks[8], (embed_size, ff_hidden_dim), jnp.float32),
        "b2":   s * jax.random.normal(ks[9], (1, embed_size), jnp.float32),
        "g2":   1.0 + s * jax.random.normal(ks[10], (1, embed_size), jnp.float32),
        "be2":  s * jax.random.normal(ks[11], (1, embed_size), jnp.float32),
    }


if __name__ == "__main__":
    # TODO(synk): dropout is implemented as identity (eval mode); stochastic
    # training-mode dropout is omitted.
    # Small demo shapes, but lane-dense E/F (multiples of 128) so stores,
    # LayerNorm reductions, and MXU N-dims are not lane-masked.
    SEQ, BATCH, EMBED, HEADS, FF = 8, 4, 128, 4, 256

    key = jax.random.PRNGKey(0)
    k_x, k_p = jax.random.split(key)
    x = jax.random.normal(k_x, (SEQ, BATCH, EMBED), jnp.float32)
    params = init_params(k_p, EMBED, FF)

    prepped = prepare_weights(params, num_heads=HEADS)   # one-time relayout
    out = transformer_block(x, prepped, num_heads=HEADS)
    out = jax.block_until_ready(out)

    ref = jax.block_until_ready(transformer_block_ref(x, params, num_heads=HEADS))
    # bf16 MXU operands + approx softmax reciprocal vs. an f32 reference.
    np.testing.assert_allclose(np.asarray(out), np.asarray(ref), atol=3e-2, rtol=3e-2)

    assert out.shape == (SEQ, BATCH, EMBED)
    print("KERNEL_OK")
</pallas_src>

<mosaic_0001>
module attributes {stable_mosaic.version = 11 : i64} {
  func.func @_transformer_block_kernel(%arg0: i32, %arg1: memref<2x8x128xf32, #tpu.memory_space<vmem>>, %arg2: memref<128x384xbf16, #tpu.memory_space<vmem>>, %arg3: memref<1x384xf32, #tpu.memory_space<vmem>>, %arg4: memref<4x32x128xbf16, #tpu.memory_space<vmem>>, %arg5: memref<1x128xf32, #tpu.memory_space<vmem>>, %arg6: memref<1x128xf32, #tpu.memory_space<vmem>>, %arg7: memref<1x128xf32, #tpu.memory_space<vmem>>, %arg8: memref<128x256xbf16, #tpu.memory_space<vmem>>, %arg9: memref<1x256xf32, #tpu.memory_space<vmem>>, %arg10: memref<256x128xbf16, #tpu.memory_space<vmem>>, %arg11: memref<1x128xf32, #tpu.memory_space<vmem>>, %arg12: memref<1x128xf32, #tpu.memory_space<vmem>>, %arg13: memref<1x128xf32, #tpu.memory_space<vmem>>, %arg14: memref<2x8x128xf32, #tpu.memory_space<vmem>>) attributes {dimension_semantics = [#tpu.dimension_semantics<parallel>], iteration_bounds = array<i64: 2>, scalar_prefetch = 0 : i64, scratch_operands = 0 : i64, tpu.core_type = #tpu.core_type<tc>, window_params = [{transform_indices = @transform_0, window_bounds = array<i64: 2, 8, 128>}, {pipeline_mode = #tpu.pipeline_mode<synchronous>, transform_indices = @transform_1, window_bounds = array<i64: 128, 384>}, {pipeline_mode = #tpu.pipeline_mode<synchronous>, transform_indices = @transform_2, window_bounds = array<i64: 1, 384>}, {pipeline_mode = #tpu.pipeline_mode<synchronous>, transform_indices = @transform_3, window_bounds = array<i64: 4, 32, 128>}, {pipeline_mode = #tpu.pipeline_mode<synchronous>, transform_indices = @transform_4, window_bounds = array<i64: 1, 128>}, {pipeline_mode = #tpu.pipeline_mode<synchronous>, transform_indices = @transform_5, window_bounds = array<i64: 1, 128>}, {pipeline_mode = #tpu.pipeline_mode<synchronous>, transform_indices = @transform_6, window_bounds = array<i64: 1, 128>}, {pipeline_mode = #tpu.pipeline_mode<synchronous>, transform_indices = @transform_7, window_bounds = array<i64: 128, 256>}, {pipeline_mode = #tpu.pipeline_mode<synchronous>, transform_indices = @transform_8, window_bounds = array<i64: 1, 256>}, {pipeline_mode = #tpu.pipeline_mode<synchronous>, transform_indices = @transform_9, window_bounds = array<i64: 256, 128>}, {pipeline_mode = #tpu.pipeline_mode<synchronous>, transform_indices = @transform_10, window_bounds = array<i64: 1, 128>}, {pipeline_mode = #tpu.pipeline_mode<synchronous>, transform_indices = @transform_11, window_bounds = array<i64: 1, 128>}, {pipeline_mode = #tpu.pipeline_mode<synchronous>, transform_indices = @transform_12, window_bounds = array<i64: 1, 128>}, {transform_indices = @transform_13, window_bounds = array<i64: 2, 8, 128>}]} {
    %c0 = arith.constant 0 : index
    %c0_0 = arith.constant 0 : index
    %c0_1 = arith.constant 0 : index
    %0 = vector.load %arg1[%c0, %c0_0, %c0_1] : memref<2x8x128xf32, #tpu.memory_space<vmem>>, vector<2x8x128xf32>
    %1 = vector.shape_cast %0 : vector<2x8x128xf32> to vector<16x128xf32>
    %2 = arith.truncf %1 : vector<16x128xf32> to vector<16x128xbf16>
    %c0_2 = arith.constant 0 : index
    %c0_3 = arith.constant 0 : index
    %3 = vector.load %arg2[%c0_2, %c0_3] : memref<128x384xbf16, #tpu.memory_space<vmem>>, vector<128x384xbf16>
    %cst = arith.constant dense<0.000000e+00> : vector<16x384xf32>
    %4 = tpu.matmul %2, %3, %cst {dimension_numbers = #tpu.dot_dimension_numbers<[1], [0], [0], [1], [0, 0, 1, 1], [], []>} : vector<16x128xbf16>, vector<128x384xbf16>, vector<16x384xf32> -> vector<16x384xf32>
    %c0_4 = arith.constant 0 : index
    %c0_5 = arith.constant 0 : index
    %5 = vector.load %arg3[%c0_4, %c0_5] : memref<1x384xf32, #tpu.memory_space<vmem>>, vector<1x384xf32>
    %6 = vector.broadcast %5 : vector<1x384xf32> to vector<16x384xf32>
    %7 = arith.addf %4, %6 : vector<16x384xf32>
    %8 = arith.truncf %7 : vector<16x384xf32> to vector<16x384xbf16>
    %cst_6 = arith.constant 0.000000e+00 : f32
    %9 = vector.broadcast %cst_6 : f32 to vector<16x128xf32>
    %10 = vector.extract_strided_slice %8 {offsets = [0, 0], sizes = [16, 32], strides = [1, 1]} : vector<16x384xbf16> to vector<16x32xbf16>
    %11 = vector.shape_cast %10 : vector<16x32xbf16> to vector<2x8x32xbf16>
    %12 = vector.extract_strided_slice %8 {offsets = [0, 128], sizes = [16, 32], strides = [1, 1]} : vector<16x384xbf16> to vector<16x32xbf16>
    %13 = vector.shape_cast %12 : vector<16x32xbf16> to vector<2x8x32xbf16>
    %14 = vector.extract_strided_slice %8 {offsets = [0, 256], sizes = [16, 32], strides = [1, 1]} : vector<16x384xbf16> to vector<16x32xbf16>
    %15 = vector.shape_cast %14 : vector<16x32xbf16> to vector<2x8x32xbf16>
    "tpu.trace_start"() <{level = 10 : i32, message = "bqd,bkd->bqk"}> : () -> ()
    %cst_7 = arith.constant dense<0.000000e+00> : vector<2x8x8xf32>
    %16 = tpu.matmul %11, %13, %cst_7 {dimension_numbers = #tpu.dot_dimension_numbers<[2], [2], [1], [1], [0, 0, 0, 1, 1, 1], [0], [0]>} : vector<2x8x32xbf16>, vector<2x8x32xbf16>, vector<2x8x8xf32> -> vector<2x8x8xf32>
    "tpu.trace_stop"() : () -> ()
    %cst_8 = arith.constant dense<0xFF800000> : vector<2x8xf32>
    %17 = vector.multi_reduction <maximumf>, %16, %cst_8 [2] : vector<2x8x8xf32> to vector<2x8xf32>
    %18 = vector.shape_cast %17 : vector<2x8xf32> to vector<2x8x1xf32>
    %19 = vector.broadcast %18 : vector<2x8x1xf32> to vector<2x8x8xf32>
    %20 = arith.subf %16, %19 : vector<2x8x8xf32>
    %21 = math.exp %20 : vector<2x8x8xf32>
    %cst_9 = arith.constant dense<0.000000e+00> : vector<2x8xf32>
    %22 = vector.multi_reduction <add>, %21, %cst_9 [2] : vector<2x8x8xf32> to vector<2x8xf32>
    %23 = vector.shape_cast %22 : vector<2x8xf32> to vector<2x8x1xf32>
    %24 = tpu.reciprocal %23 {approx = true} : vector<2x8x1xf32> -> vector<2x8x1xf32>
    %25 = vector.broadcast %24 : vector<2x8x1xf32> to vector<2x8x8xf32>
    %26 = arith.mulf %21, %25 : vector<2x8x8xf32>
    %27 = arith.truncf %26 : vector<2x8x8xf32> to vector<2x8x8xbf16>
    "tpu.trace_start"() <{level = 10 : i32, message = "bqk,bkd->bqd"}> : () -> ()
    %cst_10 = arith.constant dense<0.000000e+00> : vector<2x8x32xf32>
    %28 = tpu.matmul %27, %15, %cst_10 {dimension_numbers = #tpu.dot_dimension_numbers<[2], [1], [1], [2], [0, 0, 0, 1, 1, 2], [0], [0]>} : vector<2x8x8xbf16>, vector<2x8x32xbf16>, vector<2x8x32xf32> -> vector<2x8x32xf32>
    "tpu.trace_stop"() : () -> ()
    %29 = vector.shape_cast %28 : vector<2x8x32xf32> to vector<16x32xf32>
    %30 = arith.truncf %29 : vector<16x32xf32> to vector<16x32xbf16>
    %c0_11 = arith.constant 0 : index
    %c0_12 = arith.constant 0 : index
    %c0_13 = arith.constant 0 : index
    %31 = vector.load %arg4[%c0_11, %c0_12, %c0_13] : memref<4x32x128xbf16, #tpu.memory_space<vmem>>, vector<1x32x128xbf16>
    %32 = vector.shape_cast %31 : vector<1x32x128xbf16> to vector<32x128xbf16>
    %cst_14 = arith.constant dense<0.000000e+00> : vector<16x128xf32>
    %33 = tpu.matmul %30, %32, %cst_14 {dimension_numbers = #tpu.dot_dimension_numbers<[1], [0], [0], [1], [0, 0, 1, 1], [], []>} : vector<16x32xbf16>, vector<32x128xbf16>, vector<16x128xf32> -> vector<16x128xf32>
    %34 = arith.addf %9, %33 : vector<16x128xf32>
    %35 = vector.extract_strided_slice %8 {offsets = [0, 32], sizes = [16, 32], strides = [1, 1]} : vector<16x384xbf16> to vector<16x32xbf16>
    %36 = vector.shape_cast %35 : vector<16x32xbf16> to vector<2x8x32xbf16>
    %37 = vector.extract_strided_slice %8 {offsets = [0, 160], sizes = [16, 32], strides = [1, 1]} : vector<16x384xbf16> to vector<16x32xbf16>
    %38 = vector.shape_cast %37 : vector<16x32xbf16> to vector<2x8x32xbf16>
    %39 = vector.extract_strided_slice %8 {offsets = [0, 288], sizes = [16, 32], strides = [1, 1]} : vector<16x384xbf16> to vector<16x32xbf16>
    %40 = vector.shape_cast %39 : vector<16x32xbf16> to vector<2x8x32xbf16>
    "tpu.trace_start"() <{level = 10 : i32, message = "bqd,bkd->bqk"}> : () -> ()
    %cst_15 = arith.constant dense<0.000000e+00> : vector<2x8x8xf32>
    %41 = tpu.matmul %36, %38, %cst_15 {dimension_numbers = #tpu.dot_dimension_numbers<[2], [2], [1], [1], [0, 0, 0, 1, 1, 1], [0], [0]>} : vector<2x8x32xbf16>, vector<2x8x32xbf16>, vector<2x8x8xf32> -> vector<2x8x8xf32>
    "tpu.trace_stop"() : () -> ()
    %cst_16 = arith.constant dense<0xFF800000> : vector<2x8xf32>
    %42 = vector.multi_reduction <maximumf>, %41, %cst_16 [2] : vector<2x8x8xf32> to vector<2x8xf32>
    %43 = vector.shape_cast %42 : vector<2x8xf32> to vector<2x8x1xf32>
    %44 = vector.broadcast %43 : vector<2x8x1xf32> to vector<2x8x8xf32>
    %45 = arith.subf %41, %44 : vector<2x8x8xf32>
    %46 = math.exp %45 : vector<2x8x8xf32>
    %cst_17 = arith.constant dense<0.000000e+00> : vector<2x8xf32>
    %47 = vector.multi_reduction <add>, %46, %cst_17 [2] : vector<2x8x8xf32> to vector<2x8xf32>
    %48 = vector.shape_cast %47 : vector<2x8xf32> to vector<2x8x1xf32>
    %49 = tpu.reciprocal %48 {approx = true} : vector<2x8x1xf32> -> vector<2x8x1xf32>
    %50 = vector.broadcast %49 : vector<2x8x1xf32> to vector<2x8x8xf32>
    %51 = arith.mulf %46, %50 : vector<2x8x8xf32>
    %52 = arith.truncf %51 : vector<2x8x8xf32> to vector<2x8x8xbf16>
    "tpu.trace_start"() <{level = 10 : i32, message = "bqk,bkd->bqd"}> : () -> ()
    %cst_18 = arith.constant dense<0.000000e+00> : vector<2x8x32xf32>
    %53 = tpu.matmul %52, %40, %cst_18 {dimension_numbers = #tpu.dot_dimension_numbers<[2], [1], [1], [2], [0, 0, 0, 1, 1, 2], [0], [0]>} : vector<2x8x8xbf16>, vector<2x8x32xbf16>, vector<2x8x32xf32> -> vector<2x8x32xf32>
    "tpu.trace_stop"() : () -> ()
    %54 = vector.shape_cast %53 : vector<2x8x32xf32> to vector<16x32xf32>
    %55 = arith.truncf %54 : vector<16x32xf32> to vector<16x32xbf16>
    %c1 = arith.constant 1 : index
    %c0_19 = arith.constant 0 : index
    %c0_20 = arith.constant 0 : index
    %56 = vector.load %arg4[%c1, %c0_19, %c0_20] : memref<4x32x128xbf16, #tpu.memory_space<vmem>>, vector<1x32x128xbf16>
    %57 = vector.shape_cast %56 : vector<1x32x128xbf16> to vector<32x128xbf16>
    %cst_21 = arith.constant dense<0.000000e+00> : vector<16x128xf32>
    %58 = tpu.matmul %55, %57, %cst_21 {dimension_numbers = #tpu.dot_dimension_numbers<[1], [0], [0], [1], [0, 0, 1, 1], [], []>} : vector<16x32xbf16>, vector<32x128xbf16>, vector<16x128xf32> -> vector<16x128xf32>
    %59 = arith.addf %34, %58 : vector<16x128xf32>
    %60 = vector.extract_strided_slice %8 {offsets = [0, 64], sizes = [16, 32], strides = [1, 1]} : vector<16x384xbf16> to vector<16x32xbf16>
    %61 = vector.shape_cast %60 : vector<16x32xbf16> to vector<2x8x32xbf16>
    %62 = vector.extract_strided_slice %8 {offsets = [0, 192], sizes = [16, 32], strides = [1, 1]} : vector<16x384xbf16> to vector<16x32xbf16>
    %63 = vector.shape_cast %62 : vector<16x32xbf16> to vector<2x8x32xbf16>
    %64 = vector.extract_strided_slice %8 {offsets = [0, 320], sizes = [16, 32], strides = [1, 1]} : vector<16x384xbf16> to vector<16x32xbf16>
    %65 = vector.shape_cast %64 : vector<16x32xbf16> to vector<2x8x32xbf16>
    "tpu.trace_start"() <{level = 10 : i32, message = "bqd,bkd->bqk"}> : () -> ()
    %cst_22 = arith.constant dense<0.000000e+00> : vector<2x8x8xf32>
    %66 = tpu.matmul %61, %63, %cst_22 {dimension_numbers = #tpu.dot_dimension_numbers<[2], [2], [1], [1], [0, 0, 0, 1, 1, 1], [0], [0]>} : vector<2x8x32xbf16>, vector<2x8x32xbf16>, vector<2x8x8xf32> -> vector<2x8x8xf32>
    "tpu.trace_stop"() : () -> ()
    %cst_23 = arith.constant dense<0xFF800000> : vector<2x8xf32>
    %67 = vector.multi_reduction <maximumf>, %66, %cst_23 [2] : vector<2x8x8xf32> to vector<2x8xf32>
    %68 = vector.shape_cast %67 : vector<2x8xf32> to vector<2x8x1xf32>
    %69 = vector.broadcast %68 : vector<2x8x1xf32> to vector<2x8x8xf32>
    %70 = arith.subf %66, %69 : vector<2x8x8xf32>
    %71 = math.exp %70 : vector<2x8x8xf32>
    %cst_24 = arith.constant dense<0.000000e+00> : vector<2x8xf32>
    %72 = vector.multi_reduction <add>, %71, %cst_24 [2] : vector<2x8x8xf32> to vector<2x8xf32>
    %73 = vector.shape_cast %72 : vector<2x8xf32> to vector<2x8x1xf32>
    %74 = tpu.reciprocal %73 {approx = true} : vector<2x8x1xf32> -> vector<2x8x1xf32>
    %75 = vector.broadcast %74 : vector<2x8x1xf32> to vector<2x8x8xf32>
    %76 = arith.mulf %71, %75 : vector<2x8x8xf32>
    %77 = arith.truncf %76 : vector<2x8x8xf32> to vector<2x8x8xbf16>
    "tpu.trace_start"() <{level = 10 : i32, message = "bqk,bkd->bqd"}> : () -> ()
    %cst_25 = arith.constant dense<0.000000e+00> : vector<2x8x32xf32>
    %78 = tpu.matmul %77, %65, %cst_25 {dimension_numbers = #tpu.dot_dimension_numbers<[2], [1], [1], [2], [0, 0, 0, 1, 1, 2], [0], [0]>} : vector<2x8x8xbf16>, vector<2x8x32xbf16>, vector<2x8x32xf32> -> vector<2x8x32xf32>
    "tpu.trace_stop"() : () -> ()
    %79 = vector.shape_cast %78 : vector<2x8x32xf32> to vector<16x32xf32>
    %80 = arith.truncf %79 : vector<16x32xf32> to vector<16x32xbf16>
    %c2 = arith.constant 2 : index
    %c0_26 = arith.constant 0 : index
    %c0_27 = arith.constant 0 : index
    %81 = vector.load %arg4[%c2, %c0_26, %c0_27] : memref<4x32x128xbf16, #tpu.memory_space<vmem>>, vector<1x32x128xbf16>
    %82 = vector.shape_cast %81 : vector<1x32x128xbf16> to vector<32x128xbf16>
    %cst_28 = arith.constant dense<0.000000e+00> : vector<16x128xf32>
    %83 = tpu.matmul %80, %82, %cst_28 {dimension_numbers = #tpu.dot_dimension_numbers<[1], [0], [0], [1], [0, 0, 1, 1], [], []>} : vector<16x32xbf16>, vector<32x128xbf16>, vector<16x128xf32> -> vector<16x128xf32>
    %84 = arith.addf %59, %83 : vector<16x128xf32>
    %85 = vector.extract_strided_slice %8 {offsets = [0, 96], sizes = [16, 32], strides = [1, 1]} : vector<16x384xbf16> to vector<16x32xbf16>
    %86 = vector.shape_cast %85 : vector<16x32xbf16> to vector<2x8x32xbf16>
    %87 = vector.extract_strided_slice %8 {offsets = [0, 224], sizes = [16, 32], strides = [1, 1]} : vector<16x384xbf16> to vector<16x32xbf16>
    %88 = vector.shape_cast %87 : vector<16x32xbf16> to vector<2x8x32xbf16>
    %89 = vector.extract_strided_slice %8 {offsets = [0, 352], sizes = [16, 32], strides = [1, 1]} : vector<16x384xbf16> to vector<16x32xbf16>
    %90 = vector.shape_cast %89 : vector<16x32xbf16> to vector<2x8x32xbf16>
    "tpu.trace_start"() <{level = 10 : i32, message = "bqd,bkd->bqk"}> : () -> ()
    %cst_29 = arith.constant dense<0.000000e+00> : vector<2x8x8xf32>
    %91 = tpu.matmul %86, %88, %cst_29 {dimension_numbers = #tpu.dot_dimension_numbers<[2], [2], [1], [1], [0, 0, 0, 1, 1, 1], [0], [0]>} : vector<2x8x32xbf16>, vector<2x8x32xbf16>, vector<2x8x8xf32> -> vector<2x8x8xf32>
    "tpu.trace_stop"() : () -> ()
    %cst_30 = arith.constant dense<0xFF800000> : vector<2x8xf32>
    %92 = vector.multi_reduction <maximumf>, %91, %cst_30 [2] : vector<2x8x8xf32> to vector<2x8xf32>
    %93 = vector.shape_cast %92 : vector<2x8xf32> to vector<2x8x1xf32>
    %94 = vector.broadcast %93 : vector<2x8x1xf32> to vector<2x8x8xf32>
    %95 = arith.subf %91, %94 : vector<2x8x8xf32>
    %96 = math.exp %95 : vector<2x8x8xf32>
    %cst_31 = arith.constant dense<0.000000e+00> : vector<2x8xf32>
    %97 = vector.multi_reduction <add>, %96, %cst_31 [2] : vector<2x8x8xf32> to vector<2x8xf32>
    %98 = vector.shape_cast %97 : vector<2x8xf32> to vector<2x8x1xf32>
    %99 = tpu.reciprocal %98 {approx = true} : vector<2x8x1xf32> -> vector<2x8x1xf32>
    %100 = vector.broadcast %99 : vector<2x8x1xf32> to vector<2x8x8xf32>
    %101 = arith.mulf %96, %100 : vector<2x8x8xf32>
    %102 = arith.truncf %101 : vector<2x8x8xf32> to vector<2x8x8xbf16>
    "tpu.trace_start"() <{level = 10 : i32, message = "bqk,bkd->bqd"}> : () -> ()
    %cst_32 = arith.constant dense<0.000000e+00> : vector<2x8x32xf32>
    %103 = tpu.matmul %102, %90, %cst_32 {dimension_numbers = #tpu.dot_dimension_numbers<[2], [1], [1], [2], [0, 0, 0, 1, 1, 2], [0], [0]>} : vector<2x8x8xbf16>, vector<2x8x32xbf16>, vector<2x8x32xf32> -> vector<2x8x32xf32>
    "tpu.trace_stop"() : () -> ()
    %104 = vector.shape_cast %103 : vector<2x8x32xf32> to vector<16x32xf32>
    %105 = arith.truncf %104 : vector<16x32xf32> to vector<16x32xbf16>
    %c3 = arith.constant 3 : index
    %c0_33 = arith.constant 0 : index
    %c0_34 = arith.constant 0 : index
    %106 = vector.load %arg4[%c3, %c0_33, %c0_34] : memref<4x32x128xbf16, #tpu.memory_space<vmem>>, vector<1x32x128xbf16>
    %107 = vector.shape_cast %106 : vector<1x32x128xbf16> to vector<32x128xbf16>
    %cst_35 = arith.constant dense<0.000000e+00> : vector<16x128xf32>
    %108 = tpu.matmul %105, %107, %cst_35 {dimension_numbers = #tpu.dot_dimension_numbers<[1], [0], [0], [1], [0, 0, 1, 1], [], []>} : vector<16x32xbf16>, vector<32x128xbf16>, vector<16x128xf32> -> vector<16x128xf32>
    %109 = arith.addf %84, %108 : vector<16x128xf32>
    %c0_36 = arith.constant 0 : index
    %c0_37 = arith.constant 0 : index
    %110 = vector.load %arg5[%c0_36, %c0_37] : memref<1x128xf32, #tpu.memory_space<vmem>>, vector<1x128xf32>
    %111 = vector.broadcast %110 : vector<1x128xf32> to vector<16x128xf32>
    %112 = arith.addf %109, %111 : vector<16x128xf32>
    %113 = arith.addf %1, %112 : vector<16x128xf32>
    %cst_38 = arith.constant dense<0.000000e+00> : vector<16xf32>
    %114 = vector.multi_reduction <add>, %113, %cst_38 [1] : vector<16x128xf32> to vector<16xf32>
    %115 = vector.shape_cast %114 : vector<16xf32> to vector<16x1xf32>
    %cst_39 = arith.constant 1.280000e+02 : f32
    %116 = vector.broadcast %cst_39 : f32 to vector<16x1xf32>
    %117 = arith.divf %115, %116 : vector<16x1xf32>
    %118 = vector.broadcast %117 : vector<16x1xf32> to vector<16x128xf32>
    %119 = arith.subf %113, %118 : vector<16x128xf32>
    %120 = arith.mulf %119, %119 : vector<16x128xf32>
    %cst_40 = arith.constant dense<0.000000e+00> : vector<16xf32>
    %121 = vector.multi_reduction <add>, %120, %cst_40 [1] : vector<16x128xf32> to vector<16xf32>
    %122 = vector.shape_cast %121 : vector<16xf32> to vector<16x1xf32>
    %cst_41 = arith.constant 1.280000e+02 : f32
    %123 = vector.broadcast %cst_41 : f32 to vector<16x1xf32>
    %124 = arith.divf %122, %123 : vector<16x1xf32>
    %cst_42 = arith.constant 9.99999974E-6 : f32
    %125 = vector.broadcast %cst_42 : f32 to vector<16x1xf32>
    %126 = arith.addf %124, %125 : vector<16x1xf32>
    %127 = math.rsqrt %126 : vector<16x1xf32>
    %128 = vector.broadcast %127 : vector<16x1xf32> to vector<16x128xf32>
    %129 = arith.mulf %119, %128 : vector<16x128xf32>
    %c0_43 = arith.constant 0 : index
    %c0_44 = arith.constant 0 : index
    %130 = vector.load %arg6[%c0_43, %c0_44] : memref<1x128xf32, #tpu.memory_space<vmem>>, vector<1x128xf32>
    %131 = vector.broadcast %130 : vector<1x128xf32> to vector<16x128xf32>
    %132 = arith.mulf %129, %131 : vector<16x128xf32>
    %c0_45 = arith.constant 0 : index
    %c0_46 = arith.constant 0 : index
    %133 = vector.load %arg7[%c0_45, %c0_46] : memref<1x128xf32, #tpu.memory_space<vmem>>, vector<1x128xf32>
    %134 = vector.broadcast %133 : vector<1x128xf32> to vector<16x128xf32>
    %135 = arith.addf %132, %134 : vector<16x128xf32>
    %136 = arith.truncf %135 : vector<16x128xf32> to vector<16x128xbf16>
    %c0_47 = arith.constant 0 : index
    %c0_48 = arith.constant 0 : index
    %137 = vector.load %arg8[%c0_47, %c0_48] : memref<128x256xbf16, #tpu.memory_space<vmem>>, vector<128x256xbf16>
    %cst_49 = arith.constant dense<0.000000e+00> : vector<16x256xf32>
    %138 = tpu.matmul %136, %137, %cst_49 {dimension_numbers = #tpu.dot_dimension_numbers<[1], [0], [0], [1], [0, 0, 1, 1], [], []>} : vector<16x128xbf16>, vector<128x256xbf16>, vector<16x256xf32> -> vector<16x256xf32>
    %c0_50 = arith.constant 0 : index
    %c0_51 = arith.constant 0 : index
    %139 = vector.load %arg9[%c0_50, %c0_51] : memref<1x256xf32, #tpu.memory_space<vmem>>, vector<1x256xf32>
    %140 = vector.broadcast %139 : vector<1x256xf32> to vector<16x256xf32>
    %141 = arith.addf %138, %140 : vector<16x256xf32>
    %cst_52 = arith.constant 0.000000e+00 : f32
    %142 = vector.broadcast %cst_52 : f32 to vector<16x256xf32>
    %143 = arith.maximumf %141, %142 : vector<16x256xf32>
    %144 = arith.truncf %143 : vector<16x256xf32> to vector<16x256xbf16>
    %c0_53 = arith.constant 0 : index
    %c0_54 = arith.constant 0 : index
    %145 = vector.load %arg10[%c0_53, %c0_54] : memref<256x128xbf16, #tpu.memory_space<vmem>>, vector<256x128xbf16>
    %cst_55 = arith.constant dense<0.000000e+00> : vector<16x128xf32>
    %146 = tpu.matmul %144, %145, %cst_55 {dimension_numbers = #tpu.dot_dimension_numbers<[1], [0], [0], [1], [0, 0, 1, 1], [], []>} : vector<16x256xbf16>, vector<256x128xbf16>, vector<16x128xf32> -> vector<16x128xf32>
    %c0_56 = arith.constant 0 : index
    %c0_57 = arith.constant 0 : index
    %147 = vector.load %arg11[%c0_56, %c0_57] : memref<1x128xf32, #tpu.memory_space<vmem>>, vector<1x128xf32>
    %148 = vector.broadcast %147 : vector<1x128xf32> to vector<16x128xf32>
    %149 = arith.addf %146, %148 : vector<16x128xf32>
    %150 = arith.addf %135, %149 : vector<16x128xf32>
    %cst_58 = arith.constant dense<0.000000e+00> : vector<16xf32>
    %151 = vector.multi_reduction <add>, %150, %cst_58 [1] : vector<16x128xf32> to vector<16xf32>
    %152 = vector.shape_cast %151 : vector<16xf32> to vector<16x1xf32>
    %cst_59 = arith.constant 1.280000e+02 : f32
    %153 = vector.broadcast %cst_59 : f32 to vector<16x1xf32>
    %154 = arith.divf %152, %153 : vector<16x1xf32>
    %155 = vector.broadcast %154 : vector<16x1xf32> to vector<16x128xf32>
    %156 = arith.subf %150, %155 : vector<16x128xf32>
    %157 = arith.mulf %156, %156 : vector<16x128xf32>
    %cst_60 = arith.constant dense<0.000000e+00> : vector<16xf32>
    %158 = vector.multi_reduction <add>, %157, %cst_60 [1] : vector<16x128xf32> to vector<16xf32>
    %159 = vector.shape_cast %158 : vector<16xf32> to vector<16x1xf32>
    %cst_61 = arith.constant 1.280000e+02 : f32
    %160 = vector.broadcast %cst_61 : f32 to vector<16x1xf32>
    %161 = arith.divf %159, %160 : vector<16x1xf32>
    %cst_62 = arith.constant 9.99999974E-6 : f32
    %162 = vector.broadcast %cst_62 : f32 to vector<16x1xf32>
    %163 = arith.addf %161, %162 : vector<16x1xf32>
    %164 = math.rsqrt %163 : vector<16x1xf32>
    %165 = vector.broadcast %164 : vector<16x1xf32> to vector<16x128xf32>
    %166 = arith.mulf %156, %165 : vector<16x128xf32>
    %c0_63 = arith.constant 0 : index
    %c0_64 = arith.constant 0 : index
    %167 = vector.load %arg12[%c0_63, %c0_64] : memref<1x128xf32, #tpu.memory_space<vmem>>, vector<1x128xf32>
    %168 = vector.broadcast %167 : vector<1x128xf32> to vector<16x128xf32>
    %169 = arith.mulf %166, %168 : vector<16x128xf32>
    %c0_65 = arith.constant 0 : index
    %c0_66 = arith.constant 0 : index
    %170 = vector.load %arg13[%c0_65, %c0_66] : memref<1x128xf32, #tpu.memory_space<vmem>>, vector<1x128xf32>
    %171 = vector.broadcast %170 : vector<1x128xf32> to vector<16x128xf32>
    %172 = arith.addf %169, %171 : vector<16x128xf32>
    %173 = vector.shape_cast %172 : vector<16x128xf32> to vector<2x8x128xf32>
    %c0_67 = arith.constant 0 : index
    %c0_68 = arith.constant 0 : index
    %c0_69 = arith.constant 0 : index
    %174 = vector.load %arg14[%c0_67, %c0_68, %c0_69] : memref<2x8x128xf32, #tpu.memory_space<vmem>>, vector<2x8x128xf32>
    tpu.vector_store %arg14[%c0_67, %c0_68, %c0_69], %173 {strides = array<i32>} : memref<2x8x128xf32, #tpu.memory_space<vmem>>, vector<2x8x128xf32>,
    return
  }
  func.func @transform_0(%arg0: i32) -> (i32, i32, i32) {
    %c0_i32 = arith.constant 0 : i32
    %c0_i32_0 = arith.constant 0 : i32
    %c0_i32_1 = arith.constant 0 : i32
    return %arg0, %c0_i32, %c0_i32_0 : i32, i32, i32
  }
  func.func @transform_1(%arg0: i32) -> (i32, i32) {
    %c0_i32 = arith.constant 0 : i32
    %c0_i32_0 = arith.constant 0 : i32
    %c0_i32_1 = arith.constant 0 : i32
    return %c0_i32, %c0_i32_0 : i32, i32
  }
  func.func @transform_2(%arg0: i32) -> (i32, i32) {
    %c0_i32 = arith.constant 0 : i32
    %c0_i32_0 = arith.constant 0 : i32
    %c0_i32_1 = arith.constant 0 : i32
    return %c0_i32, %c0_i32_0 : i32, i32
  }
  func.func @transform_3(%arg0: i32) -> (i32, i32, i32) {
    %c0_i32 = arith.constant 0 : i32
    %c0_i32_0 = arith.constant 0 : i32
    %c0_i32_1 = arith.constant 0 : i32
    %c0_i32_2 = arith.constant 0 : i32
    return %c0_i32, %c0_i32_0, %c0_i32_1 : i32, i32, i32
  }
  func.func @transform_4(%arg0: i32) -> (i32, i32) {
    %c0_i32 = arith.constant 0 : i32
    %c0_i32_0 = arith.constant 0 : i32
    %c0_i32_1 = arith.constant 0 : i32
    return %c0_i32, %c0_i32_0 : i32, i32
  }
  func.func @transform_5(%arg0: i32) -> (i32, i32) {
    %c0_i32 = arith.constant 0 : i32
    %c0_i32_0 = arith.constant 0 : i32
    %c0_i32_1 = arith.constant 0 : i32
    return %c0_i32, %c0_i32_0 : i32, i32
  }
  func.func @transform_6(%arg0: i32) -> (i32, i32) {
    %c0_i32 = arith.constant 0 : i32
    %c0_i32_0 = arith.constant 0 : i32
    %c0_i32_1 = arith.constant 0 : i32
    return %c0_i32, %c0_i32_0 : i32, i32
  }
  func.func @transform_7(%arg0: i32) -> (i32, i32) {
    %c0_i32 = arith.constant 0 : i32
    %c0_i32_0 = arith.constant 0 : i32
    %c0_i32_1 = arith.constant 0 : i32
    return %c0_i32, %c0_i32_0 : i32, i32
  }
  func.func @transform_8(%arg0: i32) -> (i32, i32) {
    %c0_i32 = arith.constant 0 : i32
    %c0_i32_0 = arith.constant 0 : i32
    %c0_i32_1 = arith.constant 0 : i32
    return %c0_i32, %c0_i32_0 : i32, i32
  }
  func.func @transform_9(%arg0: i32) -> (i32, i32) {
    %c0_i32 = arith.constant 0 : i32
    %c0_i32_0 = arith.constant 0 : i32
    %c0_i32_1 = arith.constant 0 : i32
    return %c0_i32, %c0_i32_0 : i32, i32
  }
  func.func @transform_10(%arg0: i32) -> (i32, i32) {
    %c0_i32 = arith.constant 0 : i32
    %c0_i32_0 = arith.constant 0 : i32
    %c0_i32_1 = arith.constant 0 : i32
    return %c0_i32, %c0_i32_0 : i32, i32
  }
  func.func @transform_11(%arg0: i32) -> (i32, i32) {
    %c0_i32 = arith.constant 0 : i32
    %c0_i32_0 = arith.constant 0 : i32
    %c0_i32_1 = arith.constant 0 : i32
    return %c0_i32, %c0_i32_0 : i32, i32
  }
  func.func @transform_12(%arg0: i32) -> (i32, i32) {
    %c0_i32 = arith.constant 0 : i32
    %c0_i32_0 = arith.constant 0 : i32
    %c0_i32_1 = arith.constant 0 : i32
    return %c0_i32, %c0_i32_0 : i32, i32
  }
  func.func @transform_13(%arg0: i32) -> (i32, i32, i32) {
    %c0_i32 = arith.constant 0 : i32
    %c0_i32_0 = arith.constant 0 : i32
    %c0_i32_1 = arith.constant 0 : i32
    return %arg0, %c0_i32, %c0_i32_0 : i32, i32, i32
  }
}

</mosaic_0001>

<llo_original>
// kernel: tpu_custom_call.1
$region0: #{tpu_custom_call.1}
  #allocation0 [shape = 'u32[]', space=smem, size = 0x4, offset = 0x4, fixed_abs, tag = 'smem constant byte address 0x4 - core index']
  #allocation1 [shape = 'u32[72,128]{1,0:T(1,128)}', space=vmem, size = 0x9000, scoped, tag = 'internal scratch']
  %s0 = inlined_call_operand.hbm [shape: f32[4,8,128], index: 0, kind: input, shape index: {}]
  %s1 = inlined_call_operand.hbm [shape: bf16[128,384], index: 1, kind: input, shape index: {}]
  %s2 = inlined_call_operand.hbm [shape: f32[1,384], index: 2, kind: input, shape index: {}]
  %s3 = inlined_call_operand.hbm [shape: bf16[4,32,128], index: 3, kind: input, shape index: {}]
  %s4 = inlined_call_operand.vmem [shape: f32[1,128], index: 4, kind: input, shape index: {}]
  %s5 = inlined_call_operand.vmem [shape: f32[1,128], index: 5, kind: input, shape index: {}]
  %s6 = inlined_call_operand.vmem [shape: f32[1,128], index: 6, kind: input, shape index: {}]
  %s7 = inlined_call_operand.hbm [shape: bf16[128,256], index: 7, kind: input, shape index: {}]
  %s8 = inlined_call_operand.vmem [shape: f32[1,256], index: 8, kind: input, shape index: {}]
  %s9 = inlined_call_operand.hbm [shape: bf16[256,128], index: 9, kind: input, shape index: {}]
  %s10 = inlined_call_operand.vmem [shape: f32[1,128], index: 10, kind: input, shape index: {}]
  %s11 = inlined_call_operand.vmem [shape: f32[1,128], index: 11, kind: input, shape index: {}]
  %s12 = inlined_call_operand.vmem [shape: f32[1,128], index: 12, kind: input, shape index: {}]
  %s13 = inlined_call_operand.hbm [shape: f32[4,8,128], index: 13, kind: output, shape index: {}]
  %s14 = sld [smem:[#allocation0]]
  $region109: #{tpu_custom_call.1} parent=0
    _
  %s16 = ssub.s32 1, %s14
  %s17 = scalar_select 0, %s16, %s14
  $region1: #{tpu_custom_call.1} parent=0
    #allocation2 [shape = 'u8[16384]{0}', space=vmem, size = 0x4000, scoped, tag = 'input window, operand 0']
    #allocation3 [shape = 's32[2]{0}', space=sflag, size = 0x8, scoped, tag = 'scoped memory for tpu_custom_call.1']
    #allocation4 [shape = 's32[2]{0}', space=sflag, size = 0x8, scoped, tag = 'scoped memory for tpu_custom_call.1']
    #allocation5 [shape = 'u8[98304]{0}', space=vmem, size = 0x18000, scoped, tag = 'input window, operand 1, single buffered']
    #allocation6 [shape = 's32[1]{0}', space=sflag, size = 0x4, scoped, tag = 'scoped memory for tpu_custom_call.1']
    #allocation7 [shape = 'u8[1536]{0}', space=vmem, size = 0x800, scoped, tag = 'input window, operand 2, single buffered']
    #allocation8 [shape = 'u8[32768]{0}', space=vmem, size = 0x8000, scoped, tag = 'input window, operand 3, single buffered']
    #allocation9 [shape = 's32[1]{0}', space=sflag, size = 0x4, scoped, tag = 'scoped memory for tpu_custom_call.1']
    #allocation10 [shape = 'u8[65536]{0}', space=vmem, size = 0x10000, scoped, tag = 'input window, operand 7, single buffered']
    #allocation11 [shape = 'u8[65536]{0}', space=vmem, size = 0x10000, scoped, tag = 'input window, operand 9, single buffered']
    #allocation12 [shape = 's32[1]{0}', space=sflag, size = 0x4, scoped, tag = 'scoped memory for tpu_custom_call.1']
    #allocation13 [shape = 'u8[16384]{0}', space=vmem, size = 0x4000, scoped, tag = 'output window, operand 0']
    %18 = vsyncpa [#allocation3], 0
    %s19 = scalar_lea.sflag [#allocation3], 1
    %20 = vsyncpa %s19, 0
    %21 = vsyncpa [#allocation6], 0
    %22 = vsyncpa [#allocation9], 0
    %23 = vsyncpa [#allocation12], 0
    %24 = vsyncpa [#allocation4], 0
    %s25 = scalar_lea.sflag [#allocation4], 1
    %26 = vsyncpa %s25, 0
    loop: start=0, step=1, limit=4
    $region2: #{tpu_custom_call.1} parent=1 // loop_pre_header
      _
    $region3: #{tpu_custom_call.1} parent=1 // loop_header
      %s28 = sphi 0, %s32
      %p29 = scmp.ge.s32.totalorder %s28, 4
      %s38 = sphi 0, %s40
      %s41 = sphi 0, %s38
      %s42 = sphi 0, %s41
      %s58 = sphi 0, %s42
      %s62 = sphi 0, %s62
      %s64 = sphi 0, %s62
      %s65 = sphi 0, %s64
      %s79 = sphi 0, %s65
      %s83 = sphi 0, %s83
      %s85 = sphi 0, %s83
      %s86 = sphi 0, %s85
      %s100 = sphi 0, %s86
      %s104 = sphi 0, %s104
      %s106 = sphi 0, %s104
      %s107 = sphi 0, %s106
      %s121 = sphi 0, %s107
      %s125 = sphi 0, %s125
      %s127 = sphi 0, %s125
      %s128 = sphi 0, %s127
      %s142 = sphi 0, %s128
      %s146 = sphi 0, %s146
      %s148 = sphi 0, %s146
      %s149 = sphi 0, %s148
      %s163 = sphi 0, %s149
      %s167 = sphi 0, %s167
      %s169 = sphi 0, %s167
      %s170 = sphi 0, %s169
      %s184 = sphi 0, %s170
      %s188 = sphi 0, %s188
      %s190 = sphi 0, %s188
      %s191 = sphi 0, %s190
      %s205 = sphi 0, %s191
      %s209 = sphi 0, %s209
      %s211 = sphi 0, %s209
      %s212 = sphi 0, %s211
      %s226 = sphi 0, %s212
      %s230 = sphi 0, %s230
      %s232 = sphi 0, %s230
      %s233 = sphi 0, %s232
      %s247 = sphi 0, %s233
      %s251 = sphi 0, %s251
      %s253 = sphi 0, %s251
      %s254 = sphi 0, %s253
      %s268 = sphi 0, %s254
      %s272 = sphi 0, %s272
      %s274 = sphi 0, %s272
      %s275 = sphi 0, %s274
      %s289 = sphi 0, %s275
      %s293 = sphi 0, %s293
      %s295 = sphi 0, %s293
      %s296 = sphi 0, %s295
      %s310 = sphi 0, %s296
      %s316 = sphi 0, %s318
      %s319 = sphi 0, %s316
      %s320 = sphi 0, %s319
      %s336 = sphi 0, %s320
    $region4: #{tpu_custom_call.1} parent=1 // loop_header_branch
      %31 = sbr.rel (%p29) target = $region8
    $region5: #{tpu_custom_call.1} parent=1 // loop_body
      %s33 = ssub.s32 %s28, 1
      %s34 = ssub.s32 %s28, 2
      %s35 = sadd.s32 %s28, 1
      %s36 = ssub.s32 %s28, %s35
      %p37 = scmp.eq.s32.totalorder %s36, 0
      %s39 = sadd.s32 %s38, 1
      %s40 = scalar_select %p37, %s38, %s39
      %p43 = pneg %p37
      %p44 = scmp.eq.s32.totalorder %s28, 1
      %p45 = por %p43, %p44
      %p46 = scmp.ne.s32.totalorder %s38, %s41
      %p47 = scmp.eq.s32.totalorder %s28, 0
      %p48 = por %p46, %p47
      %p49 = scmp.ne.s32.totalorder %s38, %s41
      %p50 = scmp.eq.s32.totalorder %s33, 1
      %p51 = por %p49, %p50
      %p52 = scmp.ne.s32.totalorder %s41, %s42
      %p53 = scmp.eq.s32.totalorder %s33, 0
      %p54 = por %p52, %p53
      %p55 = scmp.ne.s32.totalorder %s41, %s42
      %p56 = scmp.eq.s32.totalorder %s34, 1
      %p57 = por %p55, %p56
      %p59 = scmp.ne.s32.totalorder %s42, %s58
      %p60 = scmp.eq.s32.totalorder %s34, 0
      %p61 = por %p59, %p60
      %s63 = sadd.s32 %s62, 1
      %p66 = scmp.eq.s32.totalorder %s28, 1
      %p67 = scmp.ne.s32.totalorder %s62, %s64
      %p68 = scmp.eq.s32.totalorder %s28, 0
      %p69 = por %p67, %p68
      %p70 = scmp.ne.s32.totalorder %s62, %s64
      %p71 = scmp.eq.s32.totalorder %s33, 1
      %p72 = por %p70, %p71
      %p73 = scmp.ne.s32.totalorder %s64, %s65
      %p74 = scmp.eq.s32.totalorder %s33, 0
      %p75 = por %p73, %p74
      %p76 = scmp.ne.s32.totalorder %s64, %s65
      %p77 = scmp.eq.s32.totalorder %s34, 1
      %p78 = por %p76, %p77
      %p80 = scmp.ne.s32.totalorder %s65, %s79
      %p81 = scmp.eq.s32.totalorder %s34, 0
      %p82 = por %p80, %p81
      %s84 = sadd.s32 %s83, 1
      %p87 = scmp.eq.s32.totalorder %s28, 1
      %p88 = scmp.ne.s32.totalorder %s83, %s85
      %p89 = scmp.eq.s32.totalorder %s28, 0
      %p90 = por %p88, %p89
      %p91 = scmp.ne.s32.totalorder %s83, %s85
      %p92 = scmp.eq.s32.totalorder %s33, 1
      %p93 = por %p91, %p92
      %p94 = scmp.ne.s32.totalorder %s85, %s86
      %p95 = scmp.eq.s32.totalorder %s33, 0
      %p96 = por %p94, %p95
      %p97 = scmp.ne.s32.totalorder %s85, %s86
      %p98 = scmp.eq.s32.totalorder %s34, 1
      %p99 = por %p97, %p98
      %p101 = scmp.ne.s32.totalorder %s86, %s100
      %p102 = scmp.eq.s32.totalorder %s34, 0
      %p103 = por %p101, %p102
      %s105 = sadd.s32 %s104, 1
      %p108 = scmp.eq.s32.totalorder %s28, 1
      %p109 = scmp.ne.s32.totalorder %s104, %s106
      %p110 = scmp.eq.s32.totalorder %s28, 0
      %p111 = por %p109, %p110
      %p112 = scmp.ne.s32.totalorder %s104, %s106
      %p113 = scmp.eq.s32.totalorder %s33, 1
      %p114 = por %p112, %p113
      %p115 = scmp.ne.s32.totalorder %s106, %s107
      %p116 = scmp.eq.s32.totalorder %s33, 0
      %p117 = por %p115, %p116
      %p118 = scmp.ne.s32.totalorder %s106, %s107
      %p119 = scmp.eq.s32.totalorder %s34, 1
      %p120 = por %p118, %p119
      %p122 = scmp.ne.s32.totalorder %s107, %s121
      %p123 = scmp.eq.s32.totalorder %s34, 0
      %p124 = por %p122, %p123
      %s126 = sadd.s32 %s125, 1
      %p129 = scmp.eq.s32.totalorder %s28, 1
      %p130 = scmp.ne.s32.totalorder %s125, %s127
      %p131 = scmp.eq.s32.totalorder %s28, 0
      %p132 = por %p130, %p131
      %p133 = scmp.ne.s32.totalorder %s125, %s127
      %p134 = scmp.eq.s32.totalorder %s33, 1
      %p135 = por %p133, %p134
      %p136 = scmp.ne.s32.totalorder %s127, %s128
      %p137 = scmp.eq.s32.totalorder %s33, 0
      %p138 = por %p136, %p137
      %p139 = scmp.ne.s32.totalorder %s127, %s128
      %p140 = scmp.eq.s32.totalorder %s34, 1
      %p141 = por %p139, %p140
      %p143 = scmp.ne.s32.totalorder %s128, %s142
      %p144 = scmp.eq.s32.totalorder %s34, 0
      %p145 = por %p143, %p144
      %s147 = sadd.s32 %s146, 1
      %p150 = scmp.eq.s32.totalorder %s28, 1
      %p151 = scmp.ne.s32.totalorder %s146, %s148
      %p152 = scmp.eq.s32.totalorder %s28, 0
      %p153 = por %p151, %p152
      %p154 = scmp.ne.s32.totalorder %s146, %s148
      %p155 = scmp.eq.s32.totalorder %s33, 1
      %p156 = por %p154, %p155
      %p157 = scmp.ne.s32.totalorder %s148, %s149
      %p158 = scmp.eq.s32.totalorder %s33, 0
      %p159 = por %p157, %p158
      %p160 = scmp.ne.s32.totalorder %s148, %s149
      %p161 = scmp.eq.s32.totalorder %s34, 1
      %p162 = por %p160, %p161
      %p164 = scmp.ne.s32.totalorder %s149, %s163
      %p165 = scmp.eq.s32.totalorder %s34, 0
      %p166 = por %p164, %p165
      %s168 = sadd.s32 %s167, 1
      %p171 = scmp.eq.s32.totalorder %s28, 1
      %p172 = scmp.ne.s32.totalorder %s167, %s169
      %p173 = scmp.eq.s32.totalorder %s28, 0
      %p174 = por %p172, %p173
      %p175 = scmp.ne.s32.totalorder %s167, %s169
      %p176 = scmp.eq.s32.totalorder %s33, 1
      %p177 = por %p175, %p176
      %p178 = scmp.ne.s32.totalorder %s169, %s170
      %p179 = scmp.eq.s32.totalorder %s33, 0
      %p180 = por %p178, %p179
      %p181 = scmp.ne.s32.totalorder %s169, %s170
      %p182 = scmp.eq.s32.totalorder %s34, 1
      %p183 = por %p181, %p182
      %p185 = scmp.ne.s32.totalorder %s170, %s184
      %p186 = scmp.eq.s32.totalorder %s34, 0
      %p187 = por %p185, %p186
      %s189 = sadd.s32 %s188, 1
      %p192 = scmp.eq.s32.totalorder %s28, 1
      %p193 = scmp.ne.s32.totalorder %s188, %s190
      %p194 = scmp.eq.s32.totalorder %s28, 0
      %p195 = por %p193, %p194
      %p196 = scmp.ne.s32.totalorder %s188, %s190
      %p197 = scmp.eq.s32.totalorder %s33, 1
      %p198 = por %p196, %p197
      %p199 = scmp.ne.s32.totalorder %s190, %s191
      %p200 = scmp.eq.s32.totalorder %s33, 0
      %p201 = por %p199, %p200
      %p202 = scmp.ne.s32.totalorder %s190, %s191
      %p203 = scmp.eq.s32.totalorder %s34, 1
      %p204 = por %p202, %p203
      %p206 = scmp.ne.s32.totalorder %s191, %s205
      %p207 = scmp.eq.s32.totalorder %s34, 0
      %p208 = por %p206, %p207
      %s210 = sadd.s32 %s209, 1
      %p213 = scmp.eq.s32.totalorder %s28, 1
      %p214 = scmp.ne.s32.totalorder %s209, %s211
      %p215 = scmp.eq.s32.totalorder %s28, 0
      %p216 = por %p214, %p215
      %p217 = scmp.ne.s32.totalorder %s209, %s211
      %p218 = scmp.eq.s32.totalorder %s33, 1
      %p219 = por %p217, %p218
      %p220 = scmp.ne.s32.totalorder %s211, %s212
      %p221 = scmp.eq.s32.totalorder %s33, 0
      %p222 = por %p220, %p221
      %p223 = scmp.ne.s32.totalorder %s211, %s212
      %p224 = scmp.eq.s32.totalorder %s34, 1
      %p225 = por %p223, %p224
      %p227 = scmp.ne.s32.totalorder %s212, %s226
      %p228 = scmp.eq.s32.totalorder %s34, 0
      %p229 = por %p227, %p228
      %s231 = sadd.s32 %s230, 1
      %p234 = scmp.eq.s32.totalorder %s28, 1
      %p235 = scmp.ne.s32.totalorder %s230, %s232
      %p236 = scmp.eq.s32.totalorder %s28, 0
      %p237 = por %p235, %p236
      %p238 = scmp.ne.s32.totalorder %s230, %s232
      %p239 = scmp.eq.s32.totalorder %s33, 1
      %p240 = por %p238, %p239
      %p241 = scmp.ne.s32.totalorder %s232, %s233
      %p242 = scmp.eq.s32.totalorder %s33, 0
      %p243 = por %p241, %p242
      %p244 = scmp.ne.s32.totalorder %s232, %s233
      %p245 = scmp.eq.s32.totalorder %s34, 1
      %p246 = por %p244, %p245
      %p248 = scmp.ne.s32.totalorder %s233, %s247
      %p249 = scmp.eq.s32.totalorder %s34, 0
      %p250 = por %p248, %p249
      %s252 = sadd.s32 %s251, 1
      %p255 = scmp.eq.s32.totalorder %s28, 1
      %p256 = scmp.ne.s32.totalorder %s251, %s253
      %p257 = scmp.eq.s32.totalorder %s28, 0
      %p258 = por %p256, %p257
      %p259 = scmp.ne.s32.totalorder %s251, %s253
      %p260 = scmp.eq.s32.totalorder %s33, 1
      %p261 = por %p259, %p260
      %p262 = scmp.ne.s32.totalorder %s253, %s254
      %p263 = scmp.eq.s32.totalorder %s33, 0
      %p264 = por %p262, %p263
      %p265 = scmp.ne.s32.totalorder %s253, %s254
      %p266 = scmp.eq.s32.totalorder %s34, 1
      %p267 = por %p265, %p266
      %p269 = scmp.ne.s32.totalorder %s254, %s268
      %p270 = scmp.eq.s32.totalorder %s34, 0
      %p271 = por %p269, %p270
      %s273 = sadd.s32 %s272, 1
      %p276 = scmp.eq.s32.totalorder %s28, 1
      %p277 = scmp.ne.s32.totalorder %s272, %s274
      %p278 = scmp.eq.s32.totalorder %s28, 0
      %p279 = por %p277, %p278
      %p280 = scmp.ne.s32.totalorder %s272, %s274
      %p281 = scmp.eq.s32.totalorder %s33, 1
      %p282 = por %p280, %p281
      %p283 = scmp.ne.s32.totalorder %s274, %s275
      %p284 = scmp.eq.s32.totalorder %s33, 0
      %p285 = por %p283, %p284
      %p286 = scmp.ne.s32.totalorder %s274, %s275
      %p287 = scmp.eq.s32.totalorder %s34, 1
      %p288 = por %p286, %p287
      %p290 = scmp.ne.s32.totalorder %s275, %s289
      %p291 = scmp.eq.s32.totalorder %s34, 0
      %p292 = por %p290, %p291
      %s294 = sadd.s32 %s293, 1
      %p297 = scmp.eq.s32.totalorder %s28, 1
      %p298 = scmp.ne.s32.totalorder %s293, %s295
      %p299 = scmp.eq.s32.totalorder %s28, 0
      %p300 = por %p298, %p299
      %p301 = scmp.ne.s32.totalorder %s293, %s295
      %p302 = scmp.eq.s32.totalorder %s33, 1
      %p303 = por %p301, %p302
      %p304 = scmp.ne.s32.totalorder %s295, %s296
      %p305 = scmp.eq.s32.totalorder %s33, 0
      %p306 = por %p304, %p305
      %p307 = scmp.ne.s32.totalorder %s295, %s296
      %p308 = scmp.eq.s32.totalorder %s34, 1
      %p309 = por %p307, %p308
      %p311 = scmp.ne.s32.totalorder %s296, %s310
      %p312 = scmp.eq.s32.totalorder %s34, 0
      %p313 = por %p311, %p312
      %s314 = ssub.s32 %s28, %s35
      %p315 = scmp.eq.s32.totalorder %s314, 0
      %s317 = sadd.s32 %s316, 1
      %s318 = scalar_select %p315, %s316, %s317
      %p321 = pneg %p315
      %p322 = scmp.eq.s32.totalorder %s28, 1
      %p323 = por %p321, %p322
      %p324 = scmp.ne.s32.totalorder %s316, %s319
      %p325 = scmp.eq.s32.totalorder %s28, 0
      %p326 = por %p324, %p325
      %p327 = scmp.ne.s32.totalorder %s316, %s319
      %p328 = scmp.eq.s32.totalorder %s33, 1
      %p329 = por %p327, %p328
      %p330 = scmp.ne.s32.totalorder %s319, %s320
      %p331 = scmp.eq.s32.totalorder %s33, 0
      %p332 = por %p330, %p331
      %p333 = scmp.ne.s32.totalorder %s319, %s320
      %p334 = scmp.eq.s32.totalorder %s34, 1
      %p335 = por %p333, %p334
      %p337 = scmp.ne.s32.totalorder %s320, %s336
      %p338 = scmp.eq.s32.totalorder %s34, 0
      %p339 = por %p337, %p338
      %p340 = scmp.le.s32.totalorder 1, %s28
      %p341 = scmp.lt.s32.totalorder %s28, 3
      %p342 = pnand %p340, %p341
      %p343 = pneg %p342
      // Predicated region
      $region9: #{tpu_custom_call.1} parent=5 // pred_check
        _
      $region10: #{tpu_custom_call.1} parent=5 // pred_check_branch
        %345 = sbr.rel (%p342) target = $region12
      $region11: #{tpu_custom_call.1} parent=5 // pred_region
        %s346 = ssub.s32 %s28, 1
        // Predicated region
        $region13: #{tpu_custom_call.1} parent=11 // pred_check
          %p347 = pneg %p75
        $region14: #{tpu_custom_call.1} parent=11 // pred_check_branch
          %349 = sbr.rel (%p347) target = $region16
        $region15: #{tpu_custom_call.1} parent=11 // pred_region
          %351 = vsyncadd [#allocation6], 0
          %s352 = sshll.u32 %s1, 4
          %s353 = int_to_ptr.hbm [resolvable:$true] %s352
          %s354 = sshll.u32 [#allocation5], 4
          %s355 = int_to_ptr.vmem [resolvable:$true] %s354
          %360 = dma.hbm_to_vmem [thread:$0]  %s353, 3072, %s355, [#allocation6], 192, 192, 12
        $region16: #{tpu_custom_call.1} parent=11 // pred_fallthru
          _
        // Predicated region
        $region17: #{tpu_custom_call.1} parent=11 // pred_check
          %p361 = pneg %p96
        $region18: #{tpu_custom_call.1} parent=11 // pred_check_branch
          %363 = sbr.rel (%p361) target = $region20
        $region19: #{tpu_custom_call.1} parent=11 // pred_region
          %365 = vsyncadd [#allocation6], 0
          %s367 = sshll.u32 %s2, 4
          %s368 = int_to_ptr.hbm [resolvable:$true] %s367
          %s369 = sshll.u32 [#allocation7], 4
          %s370 = int_to_ptr.vmem [resolvable:$true] %s369
          %372 = dma.hbm_to_vmem [thread:$0]  %s368, 48, %s370, [#allocation6]
        $region20: #{tpu_custom_call.1} parent=11 // pred_fallthru
          _
        // Predicated region
        $region21: #{tpu_custom_call.1} parent=11 // pred_check
          %p373 = pneg %p117
        $region22: #{tpu_custom_call.1} parent=11 // pred_check_branch
          %375 = sbr.rel (%p373) target = $region24
        $region23: #{tpu_custom_call.1} parent=11 // pred_region
          %377 = vsyncadd [#allocation9], 0
          %s378 = sshll.u32 %s3, 4
          %s379 = int_to_ptr.hbm [resolvable:$true] %s378
          %s380 = sshll.u32 [#allocation8], 4
          %s381 = int_to_ptr.vmem [resolvable:$true] %s380
          %386 = dma.hbm_to_vmem [thread:$0]  %s379, 1024, %s381, [#allocation9], 64, 64, 4
        $region24: #{tpu_custom_call.1} parent=11 // pred_fallthru
          _
        // Predicated region
        $region25: #{tpu_custom_call.1} parent=11 // pred_check
          %p387 = pneg %p138
        $region26: #{tpu_custom_call.1} parent=11 // pred_check_branch
          %389 = sbr.rel (%p387) target = $region28
        $region27: #{tpu_custom_call.1} parent=11 // pred_region
          _
        $region28: #{tpu_custom_call.1} parent=11 // pred_fallthru
          _
        // Predicated region
        $region29: #{tpu_custom_call.1} parent=11 // pred_check
          %p390 = pneg %p159
        $region30: #{tpu_custom_call.1} parent=11 // pred_check_branch
          %392 = sbr.rel (%p390) target = $region32
        $region31: #{tpu_custom_call.1} parent=11 // pred_region
          _
        $region32: #{tpu_custom_call.1} parent=11 // pred_fallthru
          _
        // Predicated region
        $region33: #{tpu_custom_call.1} parent=11 // pred_check
          %p393 = pneg %p180
        $region34: #{tpu_custom_call.1} parent=11 // pred_check_branch
          %395 = sbr.rel (%p393) target = $region36
        $region35: #{tpu_custom_call.1} parent=11 // pred_region
          _
        $region36: #{tpu_custom_call.1} parent=11 // pred_fallthru
          _
        // Predicated region
        $region37: #{tpu_custom_call.1} parent=11 // pred_check
          %p396 = pneg %p201
        $region38: #{tpu_custom_call.1} parent=11 // pred_check_branch
          %398 = sbr.rel (%p396) target = $region40
        $region39: #{tpu_custom_call.1} parent=11 // pred_region
          %400 = vsyncadd [#allocation9], 0
          %s401 = sshll.u32 %s7, 4
          %s402 = int_to_ptr.hbm [resolvable:$true] %s401
          %s403 = sshll.u32 [#allocation10], 4
          %s404 = int_to_ptr.vmem [resolvable:$true] %s403
          %409 = dma.hbm_to_vmem [thread:$0]  %s402, 2048, %s404, [#allocation9], 128, 128, 8
        $region40: #{tpu_custom_call.1} parent=11 // pred_fallthru
          _
        // Predicated region
        $region41: #{tpu_custom_call.1} parent=11 // pred_check
          %p410 = pneg %p222
        $region42: #{tpu_custom_call.1} parent=11 // pred_check_branch
          %412 = sbr.rel (%p410) target = $region44
        $region43: #{tpu_custom_call.1} parent=11 // pred_region
          _
        $region44: #{tpu_custom_call.1} parent=11 // pred_fallthru
          _
        // Predicated region
        $region45: #{tpu_custom_call.1} parent=11 // pred_check
          %p413 = pneg %p243
        $region46: #{tpu_custom_call.1} parent=11 // pred_check_branch
          %415 = sbr.rel (%p413) target = $region48
        $region47: #{tpu_custom_call.1} parent=11 // pred_region
          %417 = vsyncadd [#allocation12], 0
          %s418 = sshll.u32 %s9, 4
          %s419 = int_to_ptr.hbm [resolvable:$true] %s418
          %s420 = sshll.u32 [#allocation11], 4
          %s421 = int_to_ptr.vmem [resolvable:$true] %s420
          %426 = dma.hbm_to_vmem [thread:$0]  %s419, 2048, %s421, [#allocation12], 64, 64, 4
        $region48: #{tpu_custom_call.1} parent=11 // pred_fallthru
          _
        // Predicated region
        $region49: #{tpu_custom_call.1} parent=11 // pred_check
          %p427 = pneg %p264
        $region50: #{tpu_custom_call.1} parent=11 // pred_check_branch
          %429 = sbr.rel (%p427) target = $region52
        $region51: #{tpu_custom_call.1} parent=11 // pred_region
          _
        $region52: #{tpu_custom_call.1} parent=11 // pred_fallthru
          _
        // Predicated region
        $region53: #{tpu_custom_call.1} parent=11 // pred_check
          %p430 = pneg %p285
        $region54: #{tpu_custom_call.1} parent=11 // pred_check_branch
          %432 = sbr.rel (%p430) target = $region56
        $region55: #{tpu_custom_call.1} parent=11 // pred_region
          _
        $region56: #{tpu_custom_call.1} parent=11 // pred_fallthru
          _
        // Predicated region
        $region57: #{tpu_custom_call.1} parent=11 // pred_check
          %p433 = pneg %p306
        $region58: #{tpu_custom_call.1} parent=11 // pred_check_branch
          %435 = sbr.rel (%p433) target = $region60
        $region59: #{tpu_custom_call.1} parent=11 // pred_region
          _
        $region60: #{tpu_custom_call.1} parent=11 // pred_fallthru
          _
      $region12: #{tpu_custom_call.1} parent=5 // pred_fallthru
        _
      %p436 = scmp.lt.s32.totalorder %s28, 2
      // Predicated region
      $region61: #{tpu_custom_call.1} parent=5 // pred_check
        %p437 = pneg %p436
      $region62: #{tpu_custom_call.1} parent=5 // pred_check_branch
        %439 = sbr.rel (%p437) target = $region64
      $region63: #{tpu_custom_call.1} parent=5 // pred_region
        // Predicated region
        $region65: #{tpu_custom_call.1} parent=63 // pred_check
          %p440 = pneg %p48
        $region66: #{tpu_custom_call.1} parent=63 // pred_check_branch
          %442 = sbr.rel (%p440) target = $region68
        $region67: #{tpu_custom_call.1} parent=63 // pred_region
          %s443 = sand.u32 %s38, 1
          %s444 = scalar_lea.sflag [#allocation3], %s443
          %s445 = sand.u32 %s38, 1
          %s446 = smul.addr %s445, 16
          %s447 = scalar_lea.vmem [#allocation2], %s446
          %s448 = smul.u32 2, %s28
          %450 = vsyncadd %s444, 0
          %s451 = smul.addr %s448, 8
          %s452 = scalar_lea.hbm %s0, %s451
          %s453 = sshll.u32 %s452, 4
          %s454 = int_to_ptr.hbm [resolvable:$true] %s453
          %s455 = sshll.u32 %s447, 4
          %s456 = int_to_ptr.vmem [resolvable:$true] %s455
          %461 = dma.hbm_to_vmem [thread:$0]  %s454, 256, %s456, %s444, 128, 128, 8
        $region68: #{tpu_custom_call.1} parent=63 // pred_fallthru
          _
      $region64: #{tpu_custom_call.1} parent=5 // pred_fallthru
        _
      %p462 = scmp.le.s32.totalorder 1, %s28
      %p463 = scmp.lt.s32.totalorder %s28, 3
      %p464 = pnand %p462, %p463
      %p465 = pneg %p464
      // Predicated region
      $region69: #{tpu_custom_call.1} parent=5 // pred_check
        _
      $region70: #{tpu_custom_call.1} parent=5 // pred_check_branch
        %467 = sbr.rel (%p464) target = $region72
      $region71: #{tpu_custom_call.1} parent=5 // pred_region
        %s468 = ssub.s32 %s28, 1
        %s469 = sand.u32 %s41, 1
        %s470 = scalar_lea.sflag [#allocation3], %s469
        %s471 = sand.u32 %s41, 1
        %s472 = smul.addr %s471, 16
        %s473 = scalar_lea.vmem [#allocation2], %s472
        // Predicated region
        $region73: #{tpu_custom_call.1} parent=71 // pred_check
          %p474 = pneg %p54
        $region74: #{tpu_custom_call.1} parent=71 // pred_check_branch
          %476 = sbr.rel (%p474) target = $region76
        $region75: #{tpu_custom_call.1} parent=71 // pred_region
          %478 = dma.done %s470, 256
        $region76: #{tpu_custom_call.1} parent=71 // pred_fallthru
          _
        // Predicated region
        $region77: #{tpu_custom_call.1} parent=71 // pred_check
          %p479 = pneg %p75
        $region78: #{tpu_custom_call.1} parent=71 // pred_check_branch
          %481 = sbr.rel (%p479) target = $region80
        $region79: #{tpu_custom_call.1} parent=71 // pred_region
          %483 = dma.done [#allocation6], 3072
        $region80: #{tpu_custom_call.1} parent=71 // pred_fallthru
          _
        // Predicated region
        $region81: #{tpu_custom_call.1} parent=71 // pred_check
          %p484 = pneg %p96
        $region82: #{tpu_custom_call.1} parent=71 // pred_check_branch
          %486 = sbr.rel (%p484) target = $region84
        $region83: #{tpu_custom_call.1} parent=71 // pred_region
          %488 = dma.done [#allocation6], 48
        $region84: #{tpu_custom_call.1} parent=71 // pred_fallthru
          _
        // Predicated region
        $region85: #{tpu_custom_call.1} parent=71 // pred_check
          %p489 = pneg %p117
        $region86: #{tpu_custom_call.1} parent=71 // pred_check_branch
          %491 = sbr.rel (%p489) target = $region88
        $region87: #{tpu_custom_call.1} parent=71 // pred_region
          %493 = dma.done [#allocation9], 1024
        $region88: #{tpu_custom_call.1} parent=71 // pred_fallthru
          _
        // Predicated region
        $region89: #{tpu_custom_call.1} parent=71 // pred_check
          %p494 = pneg %p201
        $region90: #{tpu_custom_call.1} parent=71 // pred_check_branch
          %496 = sbr.rel (%p494) target = $region92
        $region91: #{tpu_custom_call.1} parent=71 // pred_region
          %498 = dma.done [#allocation9], 2048
        $region92: #{tpu_custom_call.1} parent=71 // pred_fallthru
          _
        // Predicated region
        $region93: #{tpu_custom_call.1} parent=71 // pred_check
          %p499 = pneg %p243
        $region94: #{tpu_custom_call.1} parent=71 // pred_check_branch
          %501 = sbr.rel (%p499) target = $region96
        $region95: #{tpu_custom_call.1} parent=71 // pred_region
          %503 = dma.done [#allocation12], 2048
        $region96: #{tpu_custom_call.1} parent=71 // pred_fallthru
          _
        %s504 = sand.u32 %s41, 1
        %s505 = scalar_lea.sflag [#allocation3], %s504
        %s506 = sand.u32 %s41, 1
        %s507 = smul.addr %s506, 16
        %s508 = scalar_lea.vmem [#allocation2], %s507
        %p509 = pneg %p54
        %p510 = pneg %p51
        %p511 = pneg %p75
        %p512 = pneg %p72
        %p513 = pneg %p96
        %p514 = pneg %p93
        %p515 = pneg %p117
        %p516 = pneg %p114
        %p517 = pneg %p138
        %p518 = pneg %p135
        %p519 = pneg %p159
        %p520 = pneg %p156
        %p521 = pneg %p180
        %p522 = pneg %p177
        %p523 = pneg %p201
        %p524 = pneg %p198
        %p525 = pneg %p222
        %p526 = pneg %p219
        %p527 = pneg %p243
        %p528 = pneg %p240
        %p529 = pneg %p264
        %p530 = pneg %p261
        %p531 = pneg %p285
        %p532 = pneg %p282
        %p533 = pneg %p306
        %p534 = pneg %p303
        %p535 = pneg %p332
        %p536 = pneg %p329
        %s537 = sand.u32 %s319, 1
        %s538 = scalar_lea.sflag [#allocation4], %s537
        %s539 = sand.u32 %s319, 1
        %s540 = smul.addr %s539, 16
        %s541 = scalar_lea.vmem [#allocation13], %s540
        %s542 = smul.u32 2, %s33
        %s543 = smul.u32 2, %s33
        %v545 = vld [vmem:[%s473] sm:$0xff]
        %v546 = vld [vmem:[%s473 + $0x8] sm:$0xff]
        %v547 = vpack.c.bf16 %v546, %v545
        %v548 = vld [vmem:[#allocation5] sm:$0xff]
        %v549 = vld [vmem:[#allocation5 + $0x8] sm:$0xf]
        %v550 = vld [vmem:[#allocation5 + $0xc] sm:$0xff]
        %v551 = vld [vmem:[#allocation5 + $0x14] sm:$0xf]
        %v552 = vld [vmem:[#allocation5 + $0x18] sm:$0xff]
        %v553 = vld [vmem:[#allocation5 + $0x20] sm:$0xf]
        %v554 = vld [vmem:[#allocation5 + $0x24] sm:$0xff]
        %v555 = vld [vmem:[#allocation5 + $0x2c] sm:$0xf]
        %v556 = vld [vmem:[#allocation5 + $0x30] sm:$0xff]
        %v557 = vld [vmem:[#allocation5 + $0x38] sm:$0xf]
        %v558 = vld [vmem:[#allocation5 + $0x3c] sm:$0xff]
        %v559 = vld [vmem:[#allocation5 + $0x44] sm:$0xf]
        %v560 = vld [vmem:[#allocation5 + $0x48] sm:$0xff]
        %v561 = vld [vmem:[#allocation5 + $0x50] sm:$0xf]
        %v562 = vld [vmem:[#allocation5 + $0x54] sm:$0xff]
        %v563 = vld [vmem:[#allocation5 + $0x5c] sm:$0xf]
        %v564 = vld [vmem:[#allocation5 + $0x60] sm:$0xff]
        %v565 = vld [vmem:[#allocation5 + $0x68] sm:$0xf]
        %v566 = vld [vmem:[#allocation5 + $0x6c] sm:$0xff]
        %v567 = vld [vmem:[#allocation5 + $0x74] sm:$0xf]
        %v568 = vld [vmem:[#allocation5 + $0x78] sm:$0xff]
        %v569 = vld [vmem:[#allocation5 + $0x80] sm:$0xf]
        %v570 = vld [vmem:[#allocation5 + $0x84] sm:$0xff]
        %v571 = vld [vmem:[#allocation5 + $0x8c] sm:$0xf]
        %v572 = vld [vmem:[#allocation5 + $0x90] sm:$0xff]
        %v573 = vld [vmem:[#allocation5 + $0x98] sm:$0xf]
        %v574 = vld [vmem:[#allocation5 + $0x9c] sm:$0xff]
        %v575 = vld [vmem:[#allocation5 + $0xa4] sm:$0xf]
        %v576 = vld [vmem:[#allocation5 + $0xa8] sm:$0xff]
        %v577 = vld [vmem:[#allocation5 + $0xb0] sm:$0xf]
        %v578 = vld [vmem:[#allocation5 + $0xb4] sm:$0xff]
        %v579 = vld [vmem:[#allocation5 + $0xbc] sm:$0xf]
        %v580 = vld [vmem:[#allocation7] sm:$0x7]
        %v582 = vperm.slane %v580, 0
        %v583 = vperm.slane %v580, 1
        %v584 = vperm.slane %v580, 2
        %v620 = vunpack.c.l.b16 %v548
        %v621 = vunpack.c.h.b16 %v548
        %v622 = vunpack.c.l.b16 %v549
        %v623 = vunpack.c.l.b16 %v550
        %v624 = vunpack.c.h.b16 %v550
        %v625 = vunpack.c.l.b16 %v551
        %v626 = vunpack.c.l.b16 %v552
        %v627 = vunpack.c.h.b16 %v552
        %v628 = vunpack.c.l.b16 %v553
        %v629 = vunpack.c.l.b16 %v554
        %v630 = vunpack.c.h.b16 %v554
        %v631 = vunpack.c.l.b16 %v555
        %v632 = vunpack.c.l.b16 %v556
        %v633 = vunpack.c.h.b16 %v556
        %v634 = vunpack.c.l.b16 %v557
        %v635 = vunpack.c.l.b16 %v558
        %v636 = vunpack.c.h.b16 %v558
        %v637 = vunpack.c.l.b16 %v559
        %v638 = vunpack.c.l.b16 %v560
        %v639 = vunpack.c.h.b16 %v560
        %v640 = vunpack.c.l.b16 %v561
        %v641 = vunpack.c.l.b16 %v562
        %v642 = vunpack.c.h.b16 %v562
        %v643 = vunpack.c.l.b16 %v563
        %v644 = vunpack.c.l.b16 %v564
        %v645 = vunpack.c.h.b16 %v564
        %v646 = vunpack.c.l.b16 %v565
        %v647 = vunpack.c.l.b16 %v566
        %v648 = vunpack.c.h.b16 %v566
        %v649 = vunpack.c.l.b16 %v567
        %v650 = vunpack.c.l.b16 %v568
        %v651 = vunpack.c.h.b16 %v568
        %v652 = vunpack.c.l.b16 %v569
        %v653 = vunpack.c.l.b16 %v570
        %v654 = vunpack.c.h.b16 %v570
        %v655 = vunpack.c.l.b16 %v571
        %v656 = vunpack.c.l.b16 %v572
        %v657 = vunpack.c.h.b16 %v572
        %v658 = vunpack.c.l.b16 %v573
        %v659 = vunpack.c.l.b16 %v574
        %v660 = vunpack.c.h.b16 %v574
        %v661 = vunpack.c.l.b16 %v575
        %v662 = vunpack.c.l.b16 %v576
        %v663 = vunpack.c.h.b16 %v576
        %v664 = vunpack.c.l.b16 %v577
        %v665 = vunpack.c.l.b16 %v578
        %v666 = vunpack.c.h.b16 %v578
        %v667 = vunpack.c.l.b16 %v579
        %v668 = vpack.c.b16 %v623, %v620
        %v669 = vpack.c.b16 %v624, %v621
        %v670 = vpack.c.b16 %v625, %v622
        %v671 = vpack.c.b16 %v629, %v626
        %v672 = vpack.c.b16 %v630, %v627
        %v673 = vpack.c.b16 %v631, %v628
        %v674 = vpack.c.b16 %v635, %v632
        %v675 = vpack.c.b16 %v636, %v633
        %v676 = vpack.c.b16 %v637, %v634
        %v677 = vpack.c.b16 %v641, %v638
        %v678 = vpack.c.b16 %v642, %v639
        %v679 = vpack.c.b16 %v643, %v640
        %v680 = vpack.c.b16 %v647, %v644
        %v681 = vpack.c.b16 %v648, %v645
        %v682 = vpack.c.b16 %v649, %v646
        %v683 = vpack.c.b16 %v653, %v650
        %v684 = vpack.c.b16 %v654, %v651
        %v685 = vpack.c.b16 %v655, %v652
        %v686 = vpack.c.b16 %v659, %v656
        %v687 = vpack.c.b16 %v660, %v657
        %v688 = vpack.c.b16 %v661, %v658
        %v689 = vpack.c.b16 %v665, %v662
        %v690 = vpack.c.b16 %v666, %v663
        %v691 = vpack.c.b16 %v667, %v664
        %716 = vmatpush.bf16.msra.mxu0 %v689
        %717 = vmatpush.bf16.msra.mxu0 %v686
        %718 = vmatpush.bf16.msra.mxu0 %v683
        %719 = vmatpush.bf16.msra.mxu0 %v680
        %720 = vmatpush.bf16.msra.mxu0 %v677
        %721 = vmatpush.bf16.msra.mxu0 %v674
        %722 = vmatpush.bf16.msra.mxu0 %v671
        %723 = vmatpush.bf16.msra.mxu0 %v668
        %724 = vmatmul.bf16.gmra.mxu0 %v547
        %v725 = vpop.f32.mrf.mxu0
        %v726 = vadd.f32 %v582, %v725
        %v727 = vpop.f32.mrf.mxu0
        %v728 = vadd.f32 %v582, %v727
        %729 = vdwg.mxu0
        %730 = vmatpush.bf16.msra.mxu0 %v690
        %731 = vmatpush.bf16.msra.mxu0 %v687
        %732 = vmatpush.bf16.msra.mxu0 %v684
        %733 = vmatpush.bf16.msra.mxu0 %v681
        %734 = vmatpush.bf16.msra.mxu0 %v678
        %735 = vmatpush.bf16.msra.mxu0 %v675
        %736 = vmatpush.bf16.msra.mxu0 %v672
        %737 = vmatpush.bf16.msra.mxu0 %v669
        %738 = vmatmul.bf16.gmra.mxu0 %v547
        %v739 = vpop.f32.mrf.mxu0
        %v740 = vadd.f32 %v583, %v739
        %v741 = vpop.f32.mrf.mxu0
        %v742 = vadd.f32 %v583, %v741
        %743 = vdwg.mxu0
        %744 = vmatpush.bf16.msra.mxu0 %v691
        %745 = vmatpush.bf16.msra.mxu0 %v688
        %746 = vmatpush.bf16.msra.mxu0 %v685
        %747 = vmatpush.bf16.msra.mxu0 %v682
        %748 = vmatpush.bf16.msra.mxu0 %v679
        %749 = vmatpush.bf16.msra.mxu0 %v676
        %750 = vmatpush.bf16.msra.mxu0 %v673
        %751 = vmatpush.bf16.msra.mxu0 %v670
        %752 = vmatmul.bf16.gmra.mxu0 %v547
        %v753 = vpop.f32.mrf.mxu0
        %v754 = vadd.f32 %v584, %v753
        %v755 = vpop.f32.mrf.mxu0
        %v756 = vadd.f32 %v584, %v755
        %757 = vdwg.mxu0
        %v758 = vpack.c.bf16 %v740, %v726
        %v759 = vpack.c.bf16 %v754, %v754
        %v760 = vpack.c.bf16 %v742, %v728
        %v761 = vpack.c.bf16 %v756, %v756
        %v764 = vrot.slane %v758, 4
        %v765 = vrot.slane %v760, 4
        %vm766 = vcmask 261120
        %v768 = vsel %vm766, %v758, 0
        %v771 = vsel %vm766, %v764, 0
        %773 = vmatpush.bf16.xpose.msra.mxu0 0
        %774 = vmatpush.bf16.xpose.msra.mxu0 0
        %775 = vmatpush.bf16.xpose.msra.mxu0 0
        %776 = vmatpush.bf16.xpose.msra.mxu0 0
        %777 = vmatpush.bf16.xpose.msra.mxu0 0
        %778 = vmatpush.bf16.xpose.msra.mxu0 0
        %779 = vmatpush.bf16.xpose.msra.mxu0 0
        %780 = vmatpush.bf16.xpose.msra.mxu0 %v771
        %781 = vmatmul.bf16.gmra.mxu0 %v768
        %v782 = vpop.f32.mrf.mxu0
        %v783 = vadd.f32 0.0, %v782
        %v784 = vpop.f32.mrf.mxu0
        %785 = vdwg.mxu0
        %v787 = vsel %vm766, %v760, 0
        %v790 = vsel %vm766, %v765, 0
        %792 = vmatpush.bf16.xpose.msra.mxu0 0
        %793 = vmatpush.bf16.xpose.msra.mxu0 0
        %794 = vmatpush.bf16.xpose.msra.mxu0 0
        %795 = vmatpush.bf16.xpose.msra.mxu0 0
        %796 = vmatpush.bf16.xpose.msra.mxu0 0
        %797 = vmatpush.bf16.xpose.msra.mxu0 0
        %798 = vmatpush.bf16.xpose.msra.mxu0 0
        %799 = vmatpush.bf16.xpose.msra.mxu0 %v790
        %800 = vmatmul.bf16.gmra.mxu0 %v787
        %v801 = vpop.f32.mrf.mxu0
        %v802 = vadd.f32 0.0, %v801
        %v803 = vpop.f32.mrf.mxu0
        %804 = vdwg.mxu0
        %vm805 = vcmask 64512
        %v806 = vsel %vm805, %v783, -inf
        %807 = vmax.xlane.f32.xlu0 %v806
        %v808 = vpop.xlane.xlu0 %807
        %v809 = vsel %vm805, %v802, -inf
        %810 = vmax.xlane.f32.xlu0 %v809
        %v811 = vpop.xlane.xlu0 %810
        %v812 = vsub.f32 %v783, %v808
        %v813 = vsub.f32 %v802, %v811
        %v814 = vmul.f32 %v812, 1.442695
        %v815 = vpow.pop %v814
        %v816 = vmul.f32 %v813, 1.442695
        %v817 = vpow.pop %v816
        %v818 = vsel %vm805, %v815, 0.0
        %819 = vadd.xlane.f32.xlu0 %v818
        %v820 = vpop.xlane.xlu0 %819
        %v821 = vsel %vm805, %v817, 0.0
        %822 = vadd.xlane.f32.xlu0 %v821
        %v823 = vpop.xlane.xlu0 %822
        %v824 = vrcp.pop %v820
        %v825 = vrcp.pop %v823
        %v826 = vmul.f32 %v815, %v824
        %v827 = vmul.f32 %v817, %v825
        %v828 = vpack.c.bf16 %v826, %v826
        %v829 = vpack.c.bf16 %v827, %v827
        %v831 = vsel %vm805, %v828, 0
        %vm833 = vcmask 1043456
        %v835 = vsel %vm833, %v759, 0
        %837 = vmatpush.bf16.msra.mxu0 0
        %838 = vmatpush.bf16.msra.mxu0 0
        %839 = vmatpush.bf16.msra.mxu0 0
        %840 = vmatpush.bf16.msra.mxu0 0
        %841 = vmatpush.bf16.msra.mxu0 0
        %842 = vmatpush.bf16.msra.mxu0 0
        %843 = vmatpush.bf16.msra.mxu0 0
        %844 = vmatpush.bf16.msra.mxu0 %v835
        %845 = vmatmul.bf16.gmra.mxu0 %v831
        %v846 = vpop.f32.mrf.mxu0
        %v847 = vadd.f32 0.0, %v846
        %v848 = vpop.f32.mrf.mxu0
        %849 = vdwg.mxu0
        %v851 = vsel %vm805, %v829, 0
        %v854 = vsel %vm833, %v761, 0
        %856 = vmatpush.bf16.msra.mxu0 0
        %857 = vmatpush.bf16.msra.mxu0 0
        %858 = vmatpush.bf16.msra.mxu0 0
        %859 = vmatpush.bf16.msra.mxu0 0
        %860 = vmatpush.bf16.msra.mxu0 0
        %861 = vmatpush.bf16.msra.mxu0 0
        %862 = vmatpush.bf16.msra.mxu0 0
        %863 = vmatpush.bf16.msra.mxu0 %v854
        %864 = vmatmul.bf16.gmra.mxu0 %v851
        %v865 = vpop.f32.mrf.mxu0
        %v866 = vadd.f32 0.0, %v865
        %v867 = vpop.f32.mrf.mxu0
        %868 = vdwg.mxu0
        %v869 = vpack.c.bf16 %v866, %v847
        %v870 = vld [vmem:[#allocation8] sm:$0xf]
        %v871 = vld [vmem:[#allocation8 + $0x4] sm:$0xf]
        %v872 = vld [vmem:[#allocation8 + $0x8] sm:$0xf]
        %v873 = vld [vmem:[#allocation8 + $0xc] sm:$0xf]
        %874 = vrot.lane.b32.xlu0 %v758, 96
        %v875 = vpop.permute.xlu0 %874
        %876 = vrot.lane.b32.xlu0 %v760, 96
        %v877 = vpop.permute.xlu0 %876
        %v878 = vrot.slane %v875, 4
        %v879 = vrot.slane %v877, 4
        %v880 = vunpack.c.l.b16 %v758
        %v881 = vpack.c.b16 %v880, %v880
        %882 = vrot.lane.b32.xlu0 %v881, 96
        %v883 = vpop.permute.xlu0 %882
        %v885 = vsel %vm766, %v883, 0
        %v888 = vsel %vm766, %v878, 0
        %890 = vmatpush.bf16.xpose.msra.mxu0 0
        %891 = vmatpush.bf16.xpose.msra.mxu0 0
        %892 = vmatpush.bf16.xpose.msra.mxu0 0
        %893 = vmatpush.bf16.xpose.msra.mxu0 0
        %894 = vmatpush.bf16.xpose.msra.mxu0 0
        %895 = vmatpush.bf16.xpose.msra.mxu0 0
        %896 = vmatpush.bf16.xpose.msra.mxu0 0
        %897 = vmatpush.bf16.xpose.msra.mxu0 %v888
        %898 = vmatmul.bf16.gmra.mxu0 %v885
        %v899 = vpop.f32.mrf.mxu0
        %v900 = vadd.f32 0.0, %v899
        %v901 = vpop.f32.mrf.mxu0
        %902 = vdwg.mxu0
        %v903 = vunpack.c.l.b16 %v760
        %v904 = vpack.c.b16 %v903, %v903
        %905 = vrot.lane.b32.xlu0 %v904, 96
        %v906 = vpop.permute.xlu0 %905
        %v908 = vsel %vm766, %v906, 0
        %v911 = vsel %vm766, %v879, 0
        %913 = vmatpush.bf16.xpose.msra.mxu0 0
        %914 = vmatpush.bf16.xpose.msra.mxu0 0
        %915 = vmatpush.bf16.xpose.msra.mxu0 0
        %916 = vmatpush.bf16.xpose.msra.mxu0 0
        %917 = vmatpush.bf16.xpose.msra.mxu0 0
        %918 = vmatpush.bf16.xpose.msra.mxu0 0
        %919 = vmatpush.bf16.xpose.msra.mxu0 0
        %920 = vmatpush.bf16.xpose.msra.mxu0 %v911
        %921 = vmatmul.bf16.gmra.mxu0 %v908
        %v922 = vpop.f32.mrf.mxu0
        %v923 = vadd.f32 0.0, %v922
        %v924 = vpop.f32.mrf.mxu0
        %925 = vdwg.mxu0
        %v926 = vsel %vm805, %v900, -inf
        %927 = vmax.xlane.f32.xlu0 %v926
        %v928 = vpop.xlane.xlu0 %927
        %v929 = vsel %vm805, %v923, -inf
        %930 = vmax.xlane.f32.xlu0 %v929
        %v931 = vpop.xlane.xlu0 %930
        %v932 = vsub.f32 %v900, %v928
        %v933 = vsub.f32 %v923, %v931
        %v934 = vmul.f32 %v932, 1.442695
        %v935 = vpow.pop %v934
        %v936 = vmul.f32 %v933, 1.442695
        %v937 = vpow.pop %v936
        %v938 = vsel %vm805, %v935, 0.0
        %939 = vadd.xlane.f32.xlu0 %v938
        %v940 = vpop.xlane.xlu0 %939
        %v941 = vsel %vm805, %v937, 0.0
        %942 = vadd.xlane.f32.xlu0 %v941
        %v943 = vpop.xlane.xlu0 %942
        %v944 = vrcp.pop %v940
        %v945 = vrcp.pop %v943
        %v946 = vmul.f32 %v935, %v944
        %v947 = vmul.f32 %v937, %v945
        %v948 = vpack.c.bf16 %v946, %v946
        %v949 = vpack.c.bf16 %v947, %v947
        %v951 = vunpack.c.l.b16 %v759
        %v952 = vpack.c.b16 %v951, %v951
        %953 = vrot.lane.b32.xlu0 %v952, 96
        %v954 = vpop.permute.xlu0 %953
        %v956 = vsel %vm805, %v948, 0
        %v959 = vsel %vm833, %v954, 0
        %961 = vmatpush.bf16.msra.mxu0 0
        %962 = vmatpush.bf16.msra.mxu0 0
        %963 = vmatpush.bf16.msra.mxu0 0
        %964 = vmatpush.bf16.msra.mxu0 0
        %965 = vmatpush.bf16.msra.mxu0 0
        %966 = vmatpush.bf16.msra.mxu0 0
        %967 = vmatpush.bf16.msra.mxu0 0
        %968 = vmatpush.bf16.msra.mxu0 %v959
        %969 = vmatmul.bf16.gmra.mxu0 %v956
        %v970 = vpop.f32.mrf.mxu0
        %v971 = vadd.f32 0.0, %v970
        %v972 = vpop.f32.mrf.mxu0
        %973 = vdwg.mxu0
        %v975 = vunpack.c.l.b16 %v761
        %v976 = vpack.c.b16 %v975, %v975
        %977 = vrot.lane.b32.xlu0 %v976, 96
        %v978 = vpop.permute.xlu0 %977
        %v980 = vsel %vm805, %v949, 0
        %v983 = vsel %vm833, %v978, 0
        %985 = vmatpush.bf16.msra.mxu0 0
        %986 = vmatpush.bf16.msra.mxu0 0
        %987 = vmatpush.bf16.msra.mxu0 0
        %988 = vmatpush.bf16.msra.mxu0 0
        %989 = vmatpush.bf16.msra.mxu0 0
        %990 = vmatpush.bf16.msra.mxu0 0
        %991 = vmatpush.bf16.msra.mxu0 0
        %992 = vmatpush.bf16.msra.mxu0 %v983
        %993 = vmatmul.bf16.gmra.mxu0 %v980
        %v994 = vpop.f32.mrf.mxu0
        %v995 = vadd.f32 0.0, %v994
        %v996 = vpop.f32.mrf.mxu0
        %997 = vdwg.mxu0
        %v998 = vpack.c.bf16 %v995, %v971
        %s999 = scalar_lea.vmem [#allocation8], 16
        %v1000 = vld [vmem:[%s999] sm:$0xf]
        %v1001 = vld [vmem:[%s999 + $0x4] sm:$0xf]
        %v1002 = vld [vmem:[%s999 + $0x8] sm:$0xf]
        %v1003 = vld [vmem:[%s999 + $0xc] sm:$0xf]
        %v1008 = vunpack.c.l.b16 %v1000
        %v1009 = vunpack.c.l.b16 %v1001
        %v1010 = vunpack.c.l.b16 %v1002
        %v1011 = vunpack.c.l.b16 %v1003
        %v1012 = vpack.c.b16 %v1009, %v1008
        %v1013 = vpack.c.b16 %v1011, %v1010
        %v1017 = vsel %vm766, %v998, 0
        %1019 = vmatpush.bf16.msra.mxu0 0
        %1020 = vmatpush.bf16.msra.mxu0 0
        %1021 = vmatpush.bf16.msra.mxu0 0
        %1022 = vmatpush.bf16.msra.mxu0 0
        %1023 = vmatpush.bf16.msra.mxu0 0
        %1024 = vmatpush.bf16.msra.mxu0 0
        %1025 = vmatpush.bf16.msra.mxu0 %v1013
        %1026 = vmatpush.bf16.msra.mxu0 %v1012
        %1027 = vmatmul.bf16.gmra.mxu0 %v1017
        %v1028 = vpop.f32.mrf.mxu0
        %v1029 = vadd.f32 0.0, %v1028
        %v1030 = vpop.f32.mrf.mxu0
        %v1031 = vadd.f32 0.0, %v1030
        %1032 = vdwg.mxu0
        %v1037 = vunpack.c.l.b16 %v870
        %v1038 = vunpack.c.l.b16 %v871
        %v1039 = vunpack.c.l.b16 %v872
        %v1040 = vunpack.c.l.b16 %v873
        %v1041 = vpack.c.b16 %v1038, %v1037
        %v1042 = vpack.c.b16 %v1040, %v1039
        %v1046 = vsel %vm766, %v869, 0
        %1048 = vmatpush.bf16.msra.mxu0 0
        %1049 = vmatpush.bf16.msra.mxu0 0
        %1050 = vmatpush.bf16.msra.mxu0 0
        %1051 = vmatpush.bf16.msra.mxu0 0
        %1052 = vmatpush.bf16.msra.mxu0 0
        %1053 = vmatpush.bf16.msra.mxu0 0
        %1054 = vmatpush.bf16.msra.mxu0 %v1042
        %1055 = vmatpush.bf16.msra.mxu0 %v1041
        %1056 = vmatmul.bf16.gmra.mxu0 %v1046
        %v1057 = vpop.f32.mrf.mxu0
        %v1058 = vadd.f32 %v1029, %v1057
        %v1059 = vpop.f32.mrf.mxu0
        %v1060 = vadd.f32 %v1031, %v1059
        %1061 = vdwg.mxu0
        %1062 = vrot.lane.b32.xlu0 %v758, 64
        %v1063 = vpop.permute.xlu0 %1062
        %1064 = vrot.lane.b32.xlu0 %v760, 64
        %v1065 = vpop.permute.xlu0 %1064
        %v1066 = vrot.slane %v1063, 4
        %v1067 = vrot.slane %v1065, 4
        %1068 = vrot.lane.b32.xlu0 %v881, 64
        %v1069 = vpop.permute.xlu0 %1068
        %v1071 = vsel %vm766, %v1069, 0
        %v1074 = vsel %vm766, %v1066, 0
        %1076 = vmatpush.bf16.xpose.msra.mxu0 0
        %1077 = vmatpush.bf16.xpose.msra.mxu0 0
        %1078 = vmatpush.bf16.xpose.msra.mxu0 0
        %1079 = vmatpush.bf16.xpose.msra.mxu0 0
        %1080 = vmatpush.bf16.xpose.msra.mxu0 0
        %1081 = vmatpush.bf16.xpose.msra.mxu0 0
        %1082 = vmatpush.bf16.xpose.msra.mxu0 0
        %1083 = vmatpush.bf16.xpose.msra.mxu0 %v1074
        %1084 = vmatmul.bf16.gmra.mxu0 %v1071
        %v1085 = vpop.f32.mrf.mxu0
        %v1086 = vadd.f32 0.0, %v1085
        %v1087 = vpop.f32.mrf.mxu0
        %1088 = vdwg.mxu0
        %1089 = vrot.lane.b32.xlu0 %v904, 64
        %v1090 = vpop.permute.xlu0 %1089
        %v1092 = vsel %vm766, %v1090, 0
        %v1095 = vsel %vm766, %v1067, 0
        %1097 = vmatpush.bf16.xpose.msra.mxu0 0
        %1098 = vmatpush.bf16.xpose.msra.mxu0 0
        %1099 = vmatpush.bf16.xpose.msra.mxu0 0
        %1100 = vmatpush.bf16.xpose.msra.mxu0 0
        %1101 = vmatpush.bf16.xpose.msra.mxu0 0
        %1102 = vmatpush.bf16.xpose.msra.mxu0 0
        %1103 = vmatpush.bf16.xpose.msra.mxu0 0
        %1104 = vmatpush.bf16.xpose.msra.mxu0 %v1095
        %1105 = vmatmul.bf16.gmra.mxu0 %v1092
        %v1106 = vpop.f32.mrf.mxu0
        %v1107 = vadd.f32 0.0, %v1106
        %v1108 = vpop.f32.mrf.mxu0
        %1109 = vdwg.mxu0
        %v1110 = vsel %vm805, %v1086, -inf
        %1111 = vmax.xlane.f32.xlu0 %v1110
        %v1112 = vpop.xlane.xlu0 %1111
        %v1113 = vsel %vm805, %v1107, -inf
        %1114 = vmax.xlane.f32.xlu0 %v1113
        %v1115 = vpop.xlane.xlu0 %1114
        %v1116 = vsub.f32 %v1086, %v1112
        %v1117 = vsub.f32 %v1107, %v1115
        %v1118 = vmul.f32 %v1116, 1.442695
        %v1119 = vpow.pop %v1118
        %v1120 = vmul.f32 %v1117, 1.442695
        %v1121 = vpow.pop %v1120
        %v1122 = vsel %vm805, %v1119, 0.0
        %1123 = vadd.xlane.f32.xlu0 %v1122
        %v1124 = vpop.xlane.xlu0 %1123
        %v1125 = vsel %vm805, %v1121, 0.0
        %1126 = vadd.xlane.f32.xlu0 %v1125
        %v1127 = vpop.xlane.xlu0 %1126
        %v1128 = vrcp.pop %v1124
        %v1129 = vrcp.pop %v1127
        %v1130 = vmul.f32 %v1119, %v1128
        %v1131 = vmul.f32 %v1121, %v1129
        %v1132 = vpack.c.bf16 %v1130, %v1130
        %v1133 = vpack.c.bf16 %v1131, %v1131
        %1134 = vrot.lane.b32.xlu0 %v952, 64
        %v1135 = vpop.permute.xlu0 %1134
        %v1137 = vsel %vm805, %v1132, 0
        %v1140 = vsel %vm833, %v1135, 0
        %1142 = vmatpush.bf16.msra.mxu0 0
        %1143 = vmatpush.bf16.msra.mxu0 0
        %1144 = vmatpush.bf16.msra.mxu0 0
        %1145 = vmatpush.bf16.msra.mxu0 0
        %1146 = vmatpush.bf16.msra.mxu0 0
        %1147 = vmatpush.bf16.msra.mxu0 0
        %1148 = vmatpush.bf16.msra.mxu0 0
        %1149 = vmatpush.bf16.msra.mxu0 %v1140
        %1150 = vmatmul.bf16.gmra.mxu0 %v1137
        %v1151 = vpop.f32.mrf.mxu0
        %v1152 = vadd.f32 0.0, %v1151
        %v1153 = vpop.f32.mrf.mxu0
        %1154 = vdwg.mxu0
        %1155 = vrot.lane.b32.xlu0 %v976, 64
        %v1156 = vpop.permute.xlu0 %1155
        %v1158 = vsel %vm805, %v1133, 0
        %v1161 = vsel %vm833, %v1156, 0
        %1163 = vmatpush.bf16.msra.mxu0 0
        %1164 = vmatpush.bf16.msra.mxu0 0
        %1165 = vmatpush.bf16.msra.mxu0 0
        %1166 = vmatpush.bf16.msra.mxu0 0
        %1167 = vmatpush.bf16.msra.mxu0 0
        %1168 = vmatpush.bf16.msra.mxu0 0
        %1169 = vmatpush.bf16.msra.mxu0 0
        %1170 = vmatpush.bf16.msra.mxu0 %v1161
        %1171 = vmatmul.bf16.gmra.mxu0 %v1158
        %v1172 = vpop.f32.mrf.mxu0
        %v1173 = vadd.f32 0.0, %v1172
        %v1174 = vpop.f32.mrf.mxu0
        %1175 = vdwg.mxu0
        %v1176 = vpack.c.bf16 %v1173, %v1152
        %s1177 = scalar_lea.vmem [#allocation8], 32
        %v1178 = vld [vmem:[%s1177] sm:$0xf]
        %v1179 = vld [vmem:[%s1177 + $0x4] sm:$0xf]
        %v1180 = vld [vmem:[%s1177 + $0x8] sm:$0xf]
        %v1181 = vld [vmem:[%s1177 + $0xc] sm:$0xf]
        %v1186 = vunpack.c.l.b16 %v1178
        %v1187 = vunpack.c.l.b16 %v1179
        %v1188 = vunpack.c.l.b16 %v1180
        %v1189 = vunpack.c.l.b16 %v1181
        %v1190 = vpack.c.b16 %v1187, %v1186
        %v1191 = vpack.c.b16 %v1189, %v1188
        %v1195 = vsel %vm766, %v1176, 0
        %1197 = vmatpush.bf16.msra.mxu0 0
        %1198 = vmatpush.bf16.msra.mxu0 0
        %1199 = vmatpush.bf16.msra.mxu0 0
        %1200 = vmatpush.bf16.msra.mxu0 0
        %1201 = vmatpush.bf16.msra.mxu0 0
        %1202 = vmatpush.bf16.msra.mxu0 0
        %1203 = vmatpush.bf16.msra.mxu0 %v1191
        %1204 = vmatpush.bf16.msra.mxu0 %v1190
        %1205 = vmatmul.bf16.gmra.mxu0 %v1195
        %v1206 = vpop.f32.mrf.mxu0
        %v1207 = vadd.f32 0.0, %v1206
        %v1208 = vpop.f32.mrf.mxu0
        %v1209 = vadd.f32 0.0, %v1208
        %1210 = vdwg.mxu0
        %v1211 = vadd.f32 %v1058, %v1207
        %v1212 = vadd.f32 %v1060, %v1209
        %1213 = vrot.lane.b32.xlu0 %v758, 32
        %v1214 = vpop.permute.xlu0 %1213
        %1215 = vrot.lane.b32.xlu0 %v760, 32
        %v1216 = vpop.permute.xlu0 %1215
        %v1217 = vrot.slane %v1214, 4
        %v1218 = vrot.slane %v1216, 4
        %1219 = vrot.lane.b32.xlu0 %v881, 32
        %v1220 = vpop.permute.xlu0 %1219
        %v1222 = vsel %vm766, %v1220, 0
        %v1225 = vsel %vm766, %v1217, 0
        %1227 = vmatpush.bf16.xpose.msra.mxu0 0
        %1228 = vmatpush.bf16.xpose.msra.mxu0 0
        %1229 = vmatpush.bf16.xpose.msra.mxu0 0
        %1230 = vmatpush.bf16.xpose.msra.mxu0 0
        %1231 = vmatpush.bf16.xpose.msra.mxu0 0
        %1232 = vmatpush.bf16.xpose.msra.mxu0 0
        %1233 = vmatpush.bf16.xpose.msra.mxu0 0
        %1234 = vmatpush.bf16.xpose.msra.mxu0 %v1225
        %1235 = vmatmul.bf16.gmra.mxu0 %v1222
        %v1236 = vpop.f32.mrf.mxu0
        %v1237 = vadd.f32 0.0, %v1236
        %v1238 = vpop.f32.mrf.mxu0
        %1239 = vdwg.mxu0
        %1240 = vrot.lane.b32.xlu0 %v904, 32
        %v1241 = vpop.permute.xlu0 %1240
        %v1243 = vsel %vm766, %v1241, 0
        %v1246 = vsel %vm766, %v1218, 0
        %1248 = vmatpush.bf16.xpose.msra.mxu0 0
        %1249 = vmatpush.bf16.xpose.msra.mxu0 0
        %1250 = vmatpush.bf16.xpose.msra.mxu0 0
        %1251 = vmatpush.bf16.xpose.msra.mxu0 0
        %1252 = vmatpush.bf16.xpose.msra.mxu0 0
        %1253 = vmatpush.bf16.xpose.msra.mxu0 0
        %1254 = vmatpush.bf16.xpose.msra.mxu0 0
        %1255 = vmatpush.bf16.xpose.msra.mxu0 %v1246
        %1256 = vmatmul.bf16.gmra.mxu0 %v1243
        %v1257 = vpop.f32.mrf.mxu0
        %v1258 = vadd.f32 0.0, %v1257
        %v1259 = vpop.f32.mrf.mxu0
        %1260 = vdwg.mxu0
        %v1261 = vsel %vm805, %v1237, -inf
        %1262 = vmax.xlane.f32.xlu0 %v1261
        %v1263 = vpop.xlane.xlu0 %1262
        %v1264 = vsel %vm805, %v1258, -inf
        %1265 = vmax.xlane.f32.xlu0 %v1264
        %v1266 = vpop.xlane.xlu0 %1265
        %v1267 = vsub.f32 %v1237, %v1263
        %v1268 = vsub.f32 %v1258, %v1266
        %v1269 = vmul.f32 %v1267, 1.442695
        %v1270 = vpow.pop %v1269
        %v1271 = vmul.f32 %v1268, 1.442695
        %v1272 = vpow.pop %v1271
        %v1273 = vsel %vm805, %v1270, 0.0
        %1274 = vadd.xlane.f32.xlu0 %v1273
        %v1275 = vpop.xlane.xlu0 %1274
        %v1276 = vsel %vm805, %v1272, 0.0
        %1277 = vadd.xlane.f32.xlu0 %v1276
        %v1278 = vpop.xlane.xlu0 %1277
        %v1279 = vrcp.pop %v1275
        %v1280 = vrcp.pop %v1278
        %v1281 = vmul.f32 %v1270, %v1279
        %v1282 = vmul.f32 %v1272, %v1280
        %v1283 = vpack.c.bf16 %v1281, %v1281
        %v1284 = vpack.c.bf16 %v1282, %v1282
        %1285 = vrot.lane.b32.xlu0 %v952, 32
        %v1286 = vpop.permute.xlu0 %1285
        %v1288 = vsel %vm805, %v1283, 0
        %v1291 = vsel %vm833, %v1286, 0
        %1293 = vmatpush.bf16.msra.mxu0 0
        %1294 = vmatpush.bf16.msra.mxu0 0
        %1295 = vmatpush.bf16.msra.mxu0 0
        %1296 = vmatpush.bf16.msra.mxu0 0
        %1297 = vmatpush.bf16.msra.mxu0 0
        %1298 = vmatpush.bf16.msra.mxu0 0
        %1299 = vmatpush.bf16.msra.mxu0 0
        %1300 = vmatpush.bf16.msra.mxu0 %v1291
        %1301 = vmatmul.bf16.gmra.mxu0 %v1288
        %v1302 = vpop.f32.mrf.mxu0
        %v1303 = vadd.f32 0.0, %v1302
        %v1304 = vpop.f32.mrf.mxu0
        %1305 = vdwg.mxu0
        %1306 = vrot.lane.b32.xlu0 %v976, 32
        %v1307 = vpop.permute.xlu0 %1306
        %v1309 = vsel %vm805, %v1284, 0
        %v1312 = vsel %vm833, %v1307, 0
        %1314 = vmatpush.bf16.msra.mxu0 0
        %1315 = vmatpush.bf16.msra.mxu0 0
        %1316 = vmatpush.bf16.msra.mxu0 0
        %1317 = vmatpush.bf16.msra.mxu0 0
        %1318 = vmatpush.bf16.msra.mxu0 0
        %1319 = vmatpush.bf16.msra.mxu0 0
        %1320 = vmatpush.bf16.msra.mxu0 0
        %1321 = vmatpush.bf16.msra.mxu0 %v1312
        %1322 = vmatmul.bf16.gmra.mxu0 %v1309
        %v1323 = vpop.f32.mrf.mxu0
        %v1324 = vadd.f32 0.0, %v1323
        %v1325 = vpop.f32.mrf.mxu0
        %1326 = vdwg.mxu0
        %v1327 = vpack.c.bf16 %v1324, %v1303
        %s1328 = scalar_lea.vmem [#allocation8], 48
        %v1329 = vld [vmem:[%s1328] sm:$0xf]
        %v1330 = vld [vmem:[%s1328 + $0x4] sm:$0xf]
        %v1331 = vld [vmem:[%s1328 + $0x8] sm:$0xf]
        %v1332 = vld [vmem:[%s1328 + $0xc] sm:$0xf]
        %v1337 = vunpack.c.l.b16 %v1329
        %v1338 = vunpack.c.l.b16 %v1330
        %v1339 = vunpack.c.l.b16 %v1331
        %v1340 = vunpack.c.l.b16 %v1332
        %v1341 = vpack.c.b16 %v1338, %v1337
        %v1342 = vpack.c.b16 %v1340, %v1339
        %v1346 = vsel %vm766, %v1327, 0
        %1348 = vmatpush.bf16.msra.mxu0 0
        %1349 = vmatpush.bf16.msra.mxu0 0
        %1350 = vmatpush.bf16.msra.mxu0 0
        %1351 = vmatpush.bf16.msra.mxu0 0
        %1352 = vmatpush.bf16.msra.mxu0 0
        %1353 = vmatpush.bf16.msra.mxu0 0
        %1354 = vmatpush.bf16.msra.mxu0 %v1342
        %1355 = vmatpush.bf16.msra.mxu0 %v1341
        %1356 = vmatmul.bf16.gmra.mxu0 %v1346
        %v1357 = vpop.f32.mrf.mxu0
        %v1358 = vadd.f32 0.0, %v1357
        %v1359 = vpop.f32.mrf.mxu0
        %v1360 = vadd.f32 0.0, %v1359
        %1361 = vdwg.mxu0
        %v1362 = vadd.f32 %v1211, %v1358
        %v1363 = vadd.f32 %v1212, %v1360
        %v1364 = vld [vmem:[%s4] sm:$0x1]
        %v1366 = vperm.slane %v1364, 0
        %v1368 = vadd.f32 %v1362, %v1366
        %v1369 = vadd.f32 %v1363, %v1366
        %v1370 = vadd.f32 %v545, %v1368
        %v1371 = vadd.f32 %v546, %v1369
        %1372 = vadd.xlane.f32.xlu0 %v1370
        %v1373 = vpop.xlane.xlu0 %1372
        %1374 = vadd.xlane.f32.xlu0 %v1371
        %v1375 = vpop.xlane.xlu0 %1374
        %v1376 = vrcp.pop 128.0
        %v1377 = vmul.f32 128.0, %v1376
        %v1378 = vsub.f32 1.0, %v1377
        %v1379 = vmul.f32 %v1376, %v1378
        %v1380 = vadd.f32 %v1376, %v1379
        %vm1381 = vweird.f32 %v1376
        %v1382 = vsel %vm1381, %v1376, %v1380
        %v1383 = vmul.f32 %v1373, %v1382
        %v1384 = vmul.f32 %v1375, %v1382
        %v1385 = vsub.f32 %v1370, %v1383
        %v1386 = vsub.f32 %v1371, %v1384
        %v1387 = vmul.f32 %v1385, %v1385
        %v1388 = vmul.f32 %v1386, %v1386
        %1389 = vadd.xlane.f32.xlu0 %v1387
        %v1390 = vpop.xlane.xlu0 %1389
        %1391 = vadd.xlane.f32.xlu0 %v1388
        %v1392 = vpop.xlane.xlu0 %1391
        %v1393 = vmul.f32 %v1390, %v1382
        %v1394 = vmul.f32 %v1392, %v1382
        %v1395 = vadd.f32 %v1393, 1e-05
        %v1396 = vadd.f32 %v1394, 1e-05
        %v1397 = vrsqrt.pop %v1395
        %v1398 = vmul.f32 %v1397, %v1395
        %v1399 = vmul.f32 %v1398, %v1397
        %v1400 = vmul.f32 0.5, %v1399
        %v1401 = vsub.f32 1.5, %v1400
        %v1402 = vmul.f32 %v1397, %v1401
        %vm1403 = vweird.f32 %v1395
        %vm1404 = vweird.f32 %v1397
        %vm1405 = vmor %vm1403, %vm1404
        %v1406 = vsel %vm1405, %v1397, %v1402
        %v1407 = vrsqrt.pop %v1396
        %v1408 = vmul.f32 %v1407, %v1396
        %v1409 = vmul.f32 %v1408, %v1407
        %v1410 = vmul.f32 0.5, %v1409
        %v1411 = vsub.f32 1.5, %v1410
        %v1412 = vmul.f32 %v1407, %v1411
        %vm1413 = vweird.f32 %v1396
        %vm1414 = vweird.f32 %v1407
        %vm1415 = vmor %vm1413, %vm1414
        %v1416 = vsel %vm1415, %v1407, %v1412
        %v1417 = vmul.f32 %v1385, %v1406
        %v1418 = vmul.f32 %v1386, %v1416
        %v1419 = vld [vmem:[%s5] sm:$0x1]
        %v1421 = vperm.slane %v1419, 0
        %v1423 = vmul.f32 %v1417, %v1421
        %v1424 = vmul.f32 %v1418, %v1421
        %v1425 = vld [vmem:[%s6] sm:$0x1]
        %v1427 = vperm.slane %v1425, 0
        %v1429 = vadd.f32 %v1423, %v1427
        %v1430 = vadd.f32 %v1424, %v1427
        %v1431 = vpack.c.bf16 %v1430, %v1429
        %v1432 = vld [vmem:[#allocation10] sm:$0xff]
        %v1433 = vld [vmem:[#allocation10 + $0x8] sm:$0xff]
        %v1434 = vld [vmem:[#allocation10 + $0x10] sm:$0xff]
        %v1435 = vld [vmem:[#allocation10 + $0x18] sm:$0xff]
        %v1436 = vld [vmem:[#allocation10 + $0x20] sm:$0xff]
        %v1437 = vld [vmem:[#allocation10 + $0x28] sm:$0xff]
        %v1438 = vld [vmem:[#allocation10 + $0x30] sm:$0xff]
        %v1439 = vld [vmem:[#allocation10 + $0x38] sm:$0xff]
        %v1440 = vld [vmem:[#allocation10 + $0x40] sm:$0xff]
        %v1441 = vld [vmem:[#allocation10 + $0x48] sm:$0xff]
        %v1442 = vld [vmem:[#allocation10 + $0x50] sm:$0xff]
        %v1443 = vld [vmem:[#allocation10 + $0x58] sm:$0xff]
        %v1444 = vld [vmem:[#allocation10 + $0x60] sm:$0xff]
        %v1445 = vld [vmem:[#allocation10 + $0x68] sm:$0xff]
        %v1446 = vld [vmem:[#allocation10 + $0x70] sm:$0xff]
        %v1447 = vld [vmem:[#allocation10 + $0x78] sm:$0xff]
        %v1448 = vld [vmem:[%s8] sm:$0x3]
        %v1450 = vperm.slane %v1448, 0
        %v1451 = vperm.slane %v1448, 1
        %v1470 = vunpack.c.l.b16 %v1432
        %v1471 = vunpack.c.h.b16 %v1432
        %v1472 = vunpack.c.l.b16 %v1433
        %v1473 = vunpack.c.h.b16 %v1433
        %v1474 = vunpack.c.l.b16 %v1434
        %v1475 = vunpack.c.h.b16 %v1434
        %v1476 = vunpack.c.l.b16 %v1435
        %v1477 = vunpack.c.h.b16 %v1435
        %v1478 = vunpack.c.l.b16 %v1436
        %v1479 = vunpack.c.h.b16 %v1436
        %v1480 = vunpack.c.l.b16 %v1437
        %v1481 = vunpack.c.h.b16 %v1437
        %v1482 = vunpack.c.l.b16 %v1438
        %v1483 = vunpack.c.h.b16 %v1438
        %v1484 = vunpack.c.l.b16 %v1439
        %v1485 = vunpack.c.h.b16 %v1439
        %v1486 = vunpack.c.l.b16 %v1440
        %v1487 = vunpack.c.h.b16 %v1440
        %v1488 = vunpack.c.l.b16 %v1441
        %v1489 = vunpack.c.h.b16 %v1441
        %v1490 = vunpack.c.l.b16 %v1442
        %v1491 = vunpack.c.h.b16 %v1442
        %v1492 = vunpack.c.l.b16 %v1443
        %v1493 = vunpack.c.h.b16 %v1443
        %v1494 = vunpack.c.l.b16 %v1444
        %v1495 = vunpack.c.h.b16 %v1444
        %v1496 = vunpack.c.l.b16 %v1445
        %v1497 = vunpack.c.h.b16 %v1445
        %v1498 = vunpack.c.l.b16 %v1446
        %v1499 = vunpack.c.h.b16 %v1446
        %v1500 = vunpack.c.l.b16 %v1447
        %v1501 = vunpack.c.h.b16 %v1447
        %v1502 = vpack.c.b16 %v1472, %v1470
        %v1503 = vpack.c.b16 %v1473, %v1471
        %v1504 = vpack.c.b16 %v1476, %v1474
        %v1505 = vpack.c.b16 %v1477, %v1475
        %v1506 = vpack.c.b16 %v1480, %v1478
        %v1507 = vpack.c.b16 %v1481, %v1479
        %v1508 = vpack.c.b16 %v1484, %v1482
        %v1509 = vpack.c.b16 %v1485, %v1483
        %v1510 = vpack.c.b16 %v1488, %v1486
        %v1511 = vpack.c.b16 %v1489, %v1487
        %v1512 = vpack.c.b16 %v1492, %v1490
        %v1513 = vpack.c.b16 %v1493, %v1491
        %v1514 = vpack.c.b16 %v1496, %v1494
        %v1515 = vpack.c.b16 %v1497, %v1495
        %v1516 = vpack.c.b16 %v1500, %v1498
        %v1517 = vpack.c.b16 %v1501, %v1499
        %1534 = vmatpush.bf16.msra.mxu0 %v1516
        %1535 = vmatpush.bf16.msra.mxu0 %v1514
        %1536 = vmatpush.bf16.msra.mxu0 %v1512
        %1537 = vmatpush.bf16.msra.mxu0 %v1510
        %1538 = vmatpush.bf16.msra.mxu0 %v1508
        %1539 = vmatpush.bf16.msra.mxu0 %v1506
        %1540 = vmatpush.bf16.msra.mxu0 %v1504
        %1541 = vmatpush.bf16.msra.mxu0 %v1502
        %1542 = vmatmul.bf16.gmra.mxu0 %v1431
        %v1543 = vpop.f32.mrf.mxu0
        %v1544 = vadd.f32 %v1450, %v1543
        %v1545 = vpop.f32.mrf.mxu0
        %v1546 = vadd.f32 %v1450, %v1545
        %1547 = vdwg.mxu0
        %1548 = vmatpush.bf16.msra.mxu0 %v1517
        %1549 = vmatpush.bf16.msra.mxu0 %v1515
        %1550 = vmatpush.bf16.msra.mxu0 %v1513
        %1551 = vmatpush.bf16.msra.mxu0 %v1511
        %1552 = vmatpush.bf16.msra.mxu0 %v1509
        %1553 = vmatpush.bf16.msra.mxu0 %v1507
        %1554 = vmatpush.bf16.msra.mxu0 %v1505
        %1555 = vmatpush.bf16.msra.mxu0 %v1503
        %1556 = vmatmul.bf16.gmra.mxu0 %v1431
        %v1557 = vpop.f32.mrf.mxu0
        %v1558 = vadd.f32 %v1451, %v1557
        %v1559 = vpop.f32.mrf.mxu0
        %v1560 = vadd.f32 %v1451, %v1559
        %1561 = vdwg.mxu0
        %v1562 = vmax.f32 %v1544, 0.0
        %v1563 = vmax.f32 %v1558, 0.0
        %v1564 = vmax.f32 %v1546, 0.0
        %v1565 = vmax.f32 %v1560, 0.0
        %v1566 = vpack.c.bf16 %v1564, %v1562
        %v1567 = vpack.c.bf16 %v1565, %v1563
        %v1568 = vld [vmem:[#allocation11] sm:$0xf]
        %v1569 = vld [vmem:[#allocation11 + $0x4] sm:$0xf]
        %v1570 = vld [vmem:[#allocation11 + $0x8] sm:$0xf]
        %v1571 = vld [vmem:[#allocation11 + $0xc] sm:$0xf]
        %v1572 = vld [vmem:[#allocation11 + $0x10] sm:$0xf]
        %v1573 = vld [vmem:[#allocation11 + $0x14] sm:$0xf]
        %v1574 = vld [vmem:[#allocation11 + $0x18] sm:$0xf]
        %v1575 = vld [vmem:[#allocation11 + $0x1c] sm:$0xf]
        %v1576 = vld [vmem:[#allocation11 + $0x20] sm:$0xf]
        %v1577 = vld [vmem:[#allocation11 + $0x24] sm:$0xf]
        %v1578 = vld [vmem:[#allocation11 + $0x28] sm:$0xf]
        %v1579 = vld [vmem:[#allocation11 + $0x2c] sm:$0xf]
        %v1580 = vld [vmem:[#allocation11 + $0x30] sm:$0xf]
        %v1581 = vld [vmem:[#allocation11 + $0x34] sm:$0xf]
        %v1582 = vld [vmem:[#allocation11 + $0x38] sm:$0xf]
        %v1583 = vld [vmem:[#allocation11 + $0x3c] sm:$0xf]
        %v1584 = vld [vmem:[#allocation11 + $0x40] sm:$0xf]
        %v1585 = vld [vmem:[#allocation11 + $0x44] sm:$0xf]
        %v1586 = vld [vmem:[#allocation11 + $0x48] sm:$0xf]
        %v1587 = vld [vmem:[#allocation11 + $0x4c] sm:$0xf]
        %v1588 = vld [vmem:[#allocation11 + $0x50] sm:$0xf]
        %v1589 = vld [vmem:[#allocation11 + $0x54] sm:$0xf]
        %v1590 = vld [vmem:[#allocation11 + $0x58] sm:$0xf]
        %v1591 = vld [vmem:[#allocation11 + $0x5c] sm:$0xf]
        %v1592 = vld [vmem:[#allocation11 + $0x60] sm:$0xf]
        %v1593 = vld [vmem:[#allocation11 + $0x64] sm:$0xf]
        %v1594 = vld [vmem:[#allocation11 + $0x68] sm:$0xf]
        %v1595 = vld [vmem:[#allocation11 + $0x6c] sm:$0xf]
        %v1596 = vld [vmem:[#allocation11 + $0x70] sm:$0xf]
        %v1597 = vld [vmem:[#allocation11 + $0x74] sm:$0xf]
        %v1598 = vld [vmem:[#allocation11 + $0x78] sm:$0xf]
        %v1599 = vld [vmem:[#allocation11 + $0x7c] sm:$0xf]
        %v1600 = vld [vmem:[%s10] sm:$0x1]
        %v1602 = vperm.slane %v1600, 0
        %v1636 = vunpack.c.l.b16 %v1568
        %v1637 = vunpack.c.l.b16 %v1569
        %v1638 = vunpack.c.l.b16 %v1570
        %v1639 = vunpack.c.l.b16 %v1571
        %v1640 = vunpack.c.l.b16 %v1572
        %v1641 = vunpack.c.l.b16 %v1573
        %v1642 = vunpack.c.l.b16 %v1574
        %v1643 = vunpack.c.l.b16 %v1575
        %v1644 = vunpack.c.l.b16 %v1576
        %v1645 = vunpack.c.l.b16 %v1577
        %v1646 = vunpack.c.l.b16 %v1578
        %v1647 = vunpack.c.l.b16 %v1579
        %v1648 = vunpack.c.l.b16 %v1580
        %v1649 = vunpack.c.l.b16 %v1581
        %v1650 = vunpack.c.l.b16 %v1582
        %v1651 = vunpack.c.l.b16 %v1583
        %v1652 = vunpack.c.l.b16 %v1584
        %v1653 = vunpack.c.l.b16 %v1585
        %v1654 = vunpack.c.l.b16 %v1586
        %v1655 = vunpack.c.l.b16 %v1587
        %v1656 = vunpack.c.l.b16 %v1588
        %v1657 = vunpack.c.l.b16 %v1589
        %v1658 = vunpack.c.l.b16 %v1590
        %v1659 = vunpack.c.l.b16 %v1591
        %v1660 = vunpack.c.l.b16 %v1592
        %v1661 = vunpack.c.l.b16 %v1593
        %v1662 = vunpack.c.l.b16 %v1594
        %v1663 = vunpack.c.l.b16 %v1595
        %v1664 = vunpack.c.l.b16 %v1596
        %v1665 = vunpack.c.l.b16 %v1597
        %v1666 = vunpack.c.l.b16 %v1598
        %v1667 = vunpack.c.l.b16 %v1599
        %v1668 = vpack.c.b16 %v1637, %v1636
        %v1669 = vpack.c.b16 %v1639, %v1638
        %v1670 = vpack.c.b16 %v1641, %v1640
        %v1671 = vpack.c.b16 %v1643, %v1642
        %v1672 = vpack.c.b16 %v1645, %v1644
        %v1673 = vpack.c.b16 %v1647, %v1646
        %v1674 = vpack.c.b16 %v1649, %v1648
        %v1675 = vpack.c.b16 %v1651, %v1650
        %v1676 = vpack.c.b16 %v1653, %v1652
        %v1677 = vpack.c.b16 %v1655, %v1654
        %v1678 = vpack.c.b16 %v1657, %v1656
        %v1679 = vpack.c.b16 %v1659, %v1658
        %v1680 = vpack.c.b16 %v1661, %v1660
        %v1681 = vpack.c.b16 %v1663, %v1662
        %v1682 = vpack.c.b16 %v1665, %v1664
        %v1683 = vpack.c.b16 %v1667, %v1666
        %1700 = vmatpush.bf16.msra.mxu0 %v1675
        %1701 = vmatpush.bf16.msra.mxu0 %v1674
        %1702 = vmatpush.bf16.msra.mxu0 %v1673
        %1703 = vmatpush.bf16.msra.mxu0 %v1672
        %1704 = vmatpush.bf16.msra.mxu0 %v1671
        %1705 = vmatpush.bf16.msra.mxu0 %v1670
        %1706 = vmatpush.bf16.msra.mxu0 %v1669
        %1707 = vmatpush.bf16.msra.mxu0 %v1668
        %1708 = vmatmul.bf16.gmra.mxu0 %v1566
        %v1709 = vpop.f32.mrf.mxu0
        %v1710 = vadd.f32 %v1602, %v1709
        %v1711 = vpop.f32.mrf.mxu0
        %v1712 = vadd.f32 %v1602, %v1711
        %1713 = vdwg.mxu0
        %1714 = vmatpush.bf16.msra.mxu0 %v1683
        %1715 = vmatpush.bf16.msra.mxu0 %v1682
        %1716 = vmatpush.bf16.msra.mxu0 %v1681
        %1717 = vmatpush.bf16.msra.mxu0 %v1680
        %1718 = vmatpush.bf16.msra.mxu0 %v1679
        %1719 = vmatpush.bf16.msra.mxu0 %v1678
        %1720 = vmatpush.bf16.msra.mxu0 %v1677
        %1721 = vmatpush.bf16.msra.mxu0 %v1676
        %1722 = vmatmul.bf16.gmra.mxu0 %v1567
        %v1723 = vpop.f32.mrf.mxu0
        %v1724 = vadd.f32 %v1710, %v1723
        %v1725 = vpop.f32.mrf.mxu0
        %v1726 = vadd.f32 %v1712, %v1725
        %1727 = vdwg.mxu0
        %v1728 = vadd.f32 %v1429, %v1724
        %v1729 = vadd.f32 %v1430, %v1726
        %1730 = vadd.xlane.f32.xlu0 %v1728
        %v1731 = vpop.xlane.xlu0 %1730
        %1732 = vadd.xlane.f32.xlu0 %v1729
        %v1733 = vpop.xlane.xlu0 %1732
        %v1734 = vmul.f32 %v1731, %v1382
        %v1735 = vmul.f32 %v1733, %v1382
        %v1736 = vsub.f32 %v1728, %v1734
        %v1737 = vsub.f32 %v1729, %v1735
        %v1738 = vmul.f32 %v1736, %v1736
        %v1739 = vmul.f32 %v1737, %v1737
        %1740 = vadd.xlane.f32.xlu0 %v1738
        %v1741 = vpop.xlane.xlu0 %1740
        %1742 = vadd.xlane.f32.xlu0 %v1739
        %v1743 = vpop.xlane.xlu0 %1742
        %v1744 = vmul.f32 %v1741, %v1382
        %v1745 = vmul.f32 %v1743, %v1382
        %v1746 = vadd.f32 %v1744, 1e-05
        %v1747 = vadd.f32 %v1745, 1e-05
        %v1748 = vrsqrt.pop %v1746
        %v1749 = vmul.f32 %v1748, %v1746
        %v1750 = vmul.f32 %v1749, %v1748
        %v1751 = vmul.f32 0.5, %v1750
        %v1752 = vsub.f32 1.5, %v1751
        %v1753 = vmul.f32 %v1748, %v1752
        %vm1754 = vweird.f32 %v1746
        %vm1755 = vweird.f32 %v1748
        %vm1756 = vmor %vm1754, %vm1755
        %v1757 = vsel %vm1756, %v1748, %v1753
        %v1758 = vrsqrt.pop %v1747
        %v1759 = vmul.f32 %v1758, %v1747
        %v1760 = vmul.f32 %v1759, %v1758
        %v1761 = vmul.f32 0.5, %v1760
        %v1762 = vsub.f32 1.5, %v1761
        %v1763 = vmul.f32 %v1758, %v1762
        %vm1764 = vweird.f32 %v1747
        %vm1765 = vweird.f32 %v1758
        %vm1766 = vmor %vm1764, %vm1765
        %v1767 = vsel %vm1766, %v1758, %v1763
        %v1768 = vmul.f32 %v1736, %v1757
        %v1769 = vmul.f32 %v1737, %v1767
        %v1770 = vld [vmem:[%s11] sm:$0x1]
        %v1772 = vperm.slane %v1770, 0
        %v1774 = vmul.f32 %v1768, %v1772
        %v1775 = vmul.f32 %v1769, %v1772
        %v1776 = vld [vmem:[%s12] sm:$0x1]
        %v1778 = vperm.slane %v1776, 0
        %v1780 = vadd.f32 %v1774, %v1778
        %v1781 = vadd.f32 %v1775, %v1778
        %1782 = vst [vmem:[%s541] sm:$0xff] %v1780
        %1783 = vst [vmem:[%s541 + $0x8] sm:$0xff] %v1781
        %s1784 = sand.u32 %s319, 1
        %s1785 = scalar_lea.sflag [#allocation4], %s1784
        %s1786 = sand.u32 %s319, 1
        %s1787 = smul.addr %s1786, 16
        %s1788 = scalar_lea.vmem [#allocation13], %s1787
        // Predicated region
        $region97: #{tpu_custom_call.1} parent=71 // pred_check
          %p1789 = pneg %p329
        $region98: #{tpu_custom_call.1} parent=71 // pred_check_branch
          %1791 = sbr.rel (%p1789) target = $region100
        $region99: #{tpu_custom_call.1} parent=71 // pred_region
          %s1792 = smul.u32 2, %s33
          %1794 = vsyncadd %s1785, 0
          %s1795 = smul.addr %s1792, 8
          %s1796 = scalar_lea.hbm %s13, %s1795
          %s1797 = sshll.u32 %s1788, 4
          %s1798 = int_to_ptr.vmem [resolvable:$true] %s1797
          %s1799 = sshll.u32 %s1796, 4
          %s1800 = int_to_ptr.hbm [resolvable:$true] %s1799
          %1805 = dma.vmem_to_hbm [thread:$0]  %s1798, 256, %s1800, %s1785, 128, 128, 8
        $region100: #{tpu_custom_call.1} parent=71 // pred_fallthru
          _
      $region72: #{tpu_custom_call.1} parent=5 // pred_fallthru
        _
      %p1806 = scmp.le.s32.totalorder 2, %s28
      // Predicated region
      $region101: #{tpu_custom_call.1} parent=5 // pred_check
        %p1807 = pneg %p1806
      $region102: #{tpu_custom_call.1} parent=5 // pred_check_branch
        %1809 = sbr.rel (%p1807) target = $region104
      $region103: #{tpu_custom_call.1} parent=5 // pred_region
        %s1810 = ssub.s32 %s28, 2
        // Predicated region
        $region105: #{tpu_custom_call.1} parent=103 // pred_check
          %p1811 = pneg %p335
        $region106: #{tpu_custom_call.1} parent=103 // pred_check_branch
          %1813 = sbr.rel (%p1811) target = $region108
        $region107: #{tpu_custom_call.1} parent=103 // pred_region
          %s1814 = sand.u32 %s320, 1
          %s1815 = scalar_lea.sflag [#allocation4], %s1814
          %s1816 = sand.u32 %s320, 1
          %s1817 = smul.addr %s1816, 16
          %s1818 = scalar_lea.vmem [#allocation13], %s1817
          %1820 = dma.done %s1815, 256
        $region108: #{tpu_custom_call.1} parent=103 // pred_fallthru
          _
      $region104: #{tpu_custom_call.1} parent=5 // pred_fallthru
        _
    $region6: #{tpu_custom_call.1} parent=1 // loop_footer
      %s32 = sadd.s32 1, %s28
    $region7: #{tpu_custom_call.1} parent=1 // loop_footer_branch
      %27 = sbr.rel target = $region3
    $region8: #{tpu_custom_call.1} parent=1 // loop_exit
      _
    %1821 = vsyncpa [#allocation3], 1
    %s1822 = scalar_lea.sflag [#allocation3], 1
    %1823 = vsyncpa %s1822, 1
    %1824 = vsyncpa [#allocation6], 1
    %1825 = vsyncpa [#allocation9], 1
    %1826 = vsyncpa [#allocation12], 1
    %1827 = vsyncpa [#allocation4], 1
    %s1828 = scalar_lea.sflag [#allocation4], 1
    %1829 = vsyncpa %s1828, 1

</llo_original>
